<compile_context>
chip_gen: v7x
topology: tpu7x:2x2x1
jax: 0.10.0
libtpu: 0.0.40
codegen_flags: <defaults>
</compile_context>

<pallas_src>
import jax
import jax.numpy as jnp
from jax.experimental import pallas as pl
from jax.experimental.pallas import tpu as pltpu

EPS = 1e-5  # torch.nn.BatchNorm1d default


def signal_model_kernel(state_ref, deltas_ref, w1_ref, w2_ref, w3_ref,
                        w4_ref, shifts_ref, out_ref):
    half = state_ref.shape[1]
    LC1 = w1_ref.shape[1]            # L*32
    LC2 = w2_ref.shape[1]            # L*64
    H = w3_ref.shape[1]              # 128

    # Packed shifts row: [t1 (L*32) | t2 (L*64) | fc1_b (128) | fc2_b (6)]
    # (all slice starts are multiples of 128 -> no lane rotates).
    t1 = shifts_ref[:, 0:LC1]
    t2 = shifts_ref[:, LC1:LC1 + LC2]
    b3 = shifts_ref[:, LC1 + LC2:LC1 + LC2 + H]
    b4 = shifts_ref[:, LC1 + LC2 + H:]

    # ---- Conv1d(1->32,k=3,pad=1) + BN1 + ReLU as one banded matmul (f32) ----
    # W1 rows are padded sequence positions; state feeds rows [0,half),
    # deltas feeds rows [half, L).  Output lanes are l*32 + c1.
    h1 = (jnp.dot(state_ref[...], w1_ref[0:half, :],
                  preferred_element_type=jnp.float32)
          + jnp.dot(deltas_ref[...], w1_ref[half:, :],
                    preferred_element_type=jnp.float32)
          + t1)
    h1 = jnp.maximum(h1, 0.0)                                  # (B, L*32)

    # ---- Conv1d(32->64,k=3,pad=1) + BN2 + ReLU as one block-banded matmul ----
    # Output lanes are l*64 + c2, which is already the fc1 feature order
    # (w3 is pre-permuted host-side) -> no conv->fc relayout at all.
    h2 = jnp.dot(h1.astype(jnp.bfloat16), w2_ref[...],
                 preferred_element_type=jnp.float32) + t2
    h2 = jnp.maximum(h2, 0.0)                                  # (B, L*64)

    # ---- Linear(64*L -> 128) + ReLU (single matmul, K = L*64) ----
    d1 = jnp.maximum(
        jnp.dot(h2.astype(jnp.bfloat16), w3_ref[...],
                preferred_element_type=jnp.float32) + b3, 0.0)  # (B, 128)

    # ---- Linear(128 -> 6) + Sigmoid ----
    z = jnp.dot(d1.astype(jnp.bfloat16), w4_ref[...],
                preferred_element_type=jnp.float32) + b4
    out_ref[...] = jax.nn.sigmoid(z).astype(out_ref.dtype)


def prepare_params(params, input_size):
    """One-time host-side prep: fold eval-mode BN into the conv weights, expand
    the convs into banded matmul operands, pre-permute the fc1 weight, pack all
    shift/bias vectors into one lane-aligned row.  Cached across forward calls."""
    L, C1, C2, H = input_size, 32, 64, 128
    s1 = params['bn1_g'] / jnp.sqrt(params['bn1_v'] + EPS)                 # (32,)
    t1 = s1 * (params['conv1_b'] - params['bn1_m']) + params['bn1_b']
    s2 = params['bn2_g'] / jnp.sqrt(params['bn2_v'] + EPS)                 # (64,)
    t2 = s2 * (params['conv2_b'] - params['bn2_m']) + params['bn2_b']

    p = jnp.arange(L)[:, None]          # input sequence position
    l = jnp.arange(L)[None, :]          # output sequence position
    k = p - l + 1                       # conv tap index; valid taps are 0..2
    valid = (k >= 0) & (k <= 2)
    kc = jnp.clip(k, 0, 2)

    # conv1 banded matmul: W1[p, l*32 + c1] = s1[c1] * conv1_w[c1, 0, p - l + 1]
    w1s = (params['conv1_w'][:, 0, :] * s1[:, None]).T                    # (3, 32) [k, c1]
    W1 = jnp.where(valid[:, :, None], w1s[kc], 0.0)                       # (L, L, 32)
    W1 = W1.reshape(L, L * C1).astype(jnp.float32)

    # conv2 block-banded matmul:
    #   W2[l'*32 + c1, l*64 + c2] = s2[c2] * conv2_w[c2, c1, l' - l + 1]
    w2s = jnp.transpose(params['conv2_w'] * s2[:, None, None], (2, 1, 0))  # (3, 32, 64) [k, c1, c2]
    W2 = jnp.where(valid[:, :, None, None], w2s[kc], 0.0)                  # (L, L, 32, 64) [l', l, c1, c2]
    W2 = jnp.transpose(W2, (0, 2, 1, 3)).reshape(L * C1, L * C2).astype(jnp.bfloat16)

    # fc1: torch flatten index is c2*L + l; the kernel's feature order is l*64 + c2
    W3 = jnp.transpose(params['fc1_w'].reshape(H, C2, L), (2, 1, 0)
                       ).reshape(L * C2, H).astype(jnp.bfloat16)
    W4 = params['fc2_w'].T.astype(jnp.bfloat16)                            # (128, 6)

    # Packed shifts row; every slice start is a multiple of 128 lanes.
    shifts = jnp.concatenate([jnp.tile(t1, L),          # [0, L*32)
                              jnp.tile(t2, L),          # [L*32, L*32+L*64)
                              params['fc1_b'],          # next 128
                              params['fc2_b']])         # last 6
    return dict(w1=W1, w2=W2, w3=W3, w4=W4,
                shifts=shifts.reshape(1, -1).astype(jnp.float32))


def signal_model_forward(state, deltas, prep):
    """Pallas equivalent of SignalModel.forward(state, deltas) (eval-mode BN)."""
    B = state.shape[0]
    L = prep['w1'].shape[0]
    LC1 = prep['w1'].shape[1]
    LC2 = prep['w2'].shape[1]
    H = prep['w3'].shape[1]
    O = prep['w4'].shape[1]

    flops = 2 * B * (L * LC1 + LC1 * LC2 + LC2 * H + H * O)
    bytes_accessed = (sum(int(v.size) * v.dtype.itemsize for v in prep.values())
                      + int(state.size) * 4 + int(deltas.size) * 4 + B * O * 4)

    vmem = pl.BlockSpec(memory_space=pltpu.MemorySpace.VMEM)
    # NOTE: gridless on purpose at B=8.  For large batches add a batch grid
    # (batch tile a multiple of 8), dimension_semantics=("parallel",) and
    # constant index_maps on the weight BlockSpecs so weights stay resident.
    return pl.pallas_call(
        signal_model_kernel,
        out_shape=jax.ShapeDtypeStruct((B, O), jnp.float32),
        in_specs=[vmem] * 7,
        out_specs=vmem,
        cost_estimate=pl.CostEstimate(flops=flops, transcendentals=B * O,
                                      bytes_accessed=int(bytes_accessed)),
    )(state.astype(jnp.float32), deltas.astype(jnp.float32),
      prep['w1'], prep['w2'], prep['w3'], prep['w4'], prep['shifts'])


# ------------- pure-JAX reference (NCL, like PyTorch, eval-mode BN) -------------
def ref_forward(state, deltas, params, eps=EPS):
    x = jnp.concatenate([state, deltas], axis=1)                 # (B, L)
    B, L = x.shape
    xpad = jnp.pad(x, ((0, 0), (1, 1)))                          # (B, L+2)
    W1, b1 = params['conv1_w'], params['conv1_b']                # (32,1,3), (32,)
    h = sum(W1[:, 0, k][None, :, None] * xpad[:, None, k:k + L] for k in range(3))
    h = h + b1[None, :, None]                                    # (B, 32, L)
    h = (params['bn1_g'][None, :, None] * (h - params['bn1_m'][None, :, None])
         / jnp.sqrt(params['bn1_v'][None, :, None] + eps) + params['bn1_b'][None, :, None])
    h = jnp.maximum(h, 0.0)
    hpad = jnp.pad(h, ((0, 0), (0, 0), (1, 1)))                  # (B, 32, L+2)
    W2, b2 = params['conv2_w'], params['conv2_b']                # (64,32,3), (64,)
    h2 = sum(jnp.einsum('oc,bcl->bol', W2[:, :, k], hpad[:, :, k:k + L]) for k in range(3))
    h2 = h2 + b2[None, :, None]
    h2 = (params['bn2_g'][None, :, None] * (h2 - params['bn2_m'][None, :, None])
          / jnp.sqrt(params['bn2_v'][None, :, None] + eps) + params['bn2_b'][None, :, None])
    h2 = jnp.maximum(h2, 0.0)                                    # (B, 64, L)
    flat = h2.reshape(B, -1)                                     # (B, 64*L), c-major like torch .view
    d1 = jnp.maximum(flat @ params['fc1_w'].T + params['fc1_b'], 0.0)
    return jax.nn.sigmoid(d1 @ params['fc2_w'].T + params['fc2_b'])


def init_params(key, input_size):
    L = input_size
    ks = jax.random.split(key, 16)
    n = lambda k, s, sc=0.1: (sc * jax.random.normal(k, s)).astype(jnp.float32)
    u = lambda k, s: jax.random.uniform(k, s, minval=0.5, maxval=1.5).astype(jnp.float32)
    return dict(
        conv1_w=n(ks[0], (32, 1, 3)),  conv1_b=n(ks[1], (32,)),
        bn1_g=1.0 + n(ks[2], (32,), 0.05), bn1_b=n(ks[3], (32,), 0.05),
        bn1_m=n(ks[4], (32,), 0.05),       bn1_v=u(ks[5], (32,)),
        conv2_w=n(ks[6], (64, 32, 3)), conv2_b=n(ks[7], (64,)),
        bn2_g=1.0 + n(ks[8], (64,), 0.05), bn2_b=n(ks[9], (64,), 0.05),
        bn2_m=n(ks[10], (64,), 0.05),      bn2_v=u(ks[11], (64,)),
        fc1_w=n(ks[12], (128, 64 * L), 0.05), fc1_b=n(ks[13], (128,)),
        fc2_w=n(ks[14], (6, 128)),            fc2_b=n(ks[15], (6,)),
    )


if __name__ == "__main__":
    key = jax.random.PRNGKey(0)
    kp, k_state, k_delta = jax.random.split(key, 3)

    B, half = 8, 8
    input_size = 2 * half                        # combined signal length L = 16
    params = init_params(kp, input_size)
    state = jax.random.normal(k_state, (B, half), dtype=jnp.float32)
    deltas = jax.random.normal(k_delta, (B, half), dtype=jnp.float32)

    prep = prepare_params(params, input_size)    # one-time folded/banded weights
    fwd = jax.jit(signal_model_forward)

    out = jax.block_until_ready(fwd(state, deltas, prep))

    ref = ref_forward(state, deltas, params)
    assert out.shape == (B, 6), out.shape
    assert bool(jnp.allclose(out, ref, rtol=1e-3, atol=1e-3)), (out, ref)

    print("KERNEL_OK")
</pallas_src>

<mosaic_0001>
module attributes {stable_mosaic.version = 11 : i64} {
  func.func @signal_model_kernel(%arg0: memref<8x8xf32, #tpu.memory_space<vmem>>, %arg1: memref<8x8xf32, #tpu.memory_space<vmem>>, %arg2: memref<16x512xf32, #tpu.memory_space<vmem>>, %arg3: memref<512x1024xbf16, #tpu.memory_space<vmem>>, %arg4: memref<1024x128xbf16, #tpu.memory_space<vmem>>, %arg5: memref<128x6xbf16, #tpu.memory_space<vmem>>, %arg6: memref<1x1670xf32, #tpu.memory_space<vmem>>, %arg7: memref<8x6xf32, #tpu.memory_space<vmem>>) attributes {dimension_semantics = [], scalar_prefetch = 0 : i64, scratch_operands = 0 : i64, tpu.core_type = #tpu.core_type<tc>} {
    %c0 = arith.constant 0 : index
    %c0_0 = arith.constant 0 : index
    %0 = vector.load %arg6[%c0, %c0_0] : memref<1x1670xf32, #tpu.memory_space<vmem>>, vector<1x512xf32>
    %c0_1 = arith.constant 0 : index
    %c512 = arith.constant 512 : index
    %1 = vector.load %arg6[%c0_1, %c512] : memref<1x1670xf32, #tpu.memory_space<vmem>>, vector<1x1024xf32>
    %c0_2 = arith.constant 0 : index
    %c1536 = arith.constant 1536 : index
    %2 = vector.load %arg6[%c0_2, %c1536] : memref<1x1670xf32, #tpu.memory_space<vmem>>, vector<1x128xf32>
    %c0_3 = arith.constant 0 : index
    %c1664 = arith.constant 1664 : index
    %3 = vector.load %arg6[%c0_3, %c1664] : memref<1x1670xf32, #tpu.memory_space<vmem>>, vector<1x6xf32>
    %c0_4 = arith.constant 0 : index
    %c0_5 = arith.constant 0 : index
    %4 = vector.load %arg0[%c0_4, %c0_5] : memref<8x8xf32, #tpu.memory_space<vmem>>, vector<8x8xf32>
    %c0_6 = arith.constant 0 : index
    %c0_7 = arith.constant 0 : index
    %5 = vector.load %arg2[%c0_6, %c0_7] : memref<16x512xf32, #tpu.memory_space<vmem>>, vector<8x512xf32>
    %cst = arith.constant dense<0.000000e+00> : vector<8x512xf32>
    %6 = tpu.matmul %4, %5, %cst {dimension_numbers = #tpu.dot_dimension_numbers<[1], [0], [0], [1], [0, 0, 1, 1], [], []>} : vector<8x8xf32>, vector<8x512xf32>, vector<8x512xf32> -> vector<8x512xf32>
    %c0_8 = arith.constant 0 : index
    %c0_9 = arith.constant 0 : index
    %7 = vector.load %arg1[%c0_8, %c0_9] : memref<8x8xf32, #tpu.memory_space<vmem>>, vector<8x8xf32>
    %c8 = arith.constant 8 : index
    %c0_10 = arith.constant 0 : index
    %8 = vector.load %arg2[%c8, %c0_10] : memref<16x512xf32, #tpu.memory_space<vmem>>, vector<8x512xf32>
    %cst_11 = arith.constant dense<0.000000e+00> : vector<8x512xf32>
    %9 = tpu.matmul %7, %8, %cst_11 {dimension_numbers = #tpu.dot_dimension_numbers<[1], [0], [0], [1], [0, 0, 1, 1], [], []>} : vector<8x8xf32>, vector<8x512xf32>, vector<8x512xf32> -> vector<8x512xf32>
    %10 = arith.addf %6, %9 : vector<8x512xf32>
    %11 = vector.broadcast %0 : vector<1x512xf32> to vector<8x512xf32>
    %12 = arith.addf %10, %11 : vector<8x512xf32>
    %cst_12 = arith.constant 0.000000e+00 : f32
    %13 = vector.broadcast %cst_12 : f32 to vector<8x512xf32>
    %14 = arith.maximumf %12, %13 : vector<8x512xf32>
    %15 = arith.truncf %14 : vector<8x512xf32> to vector<8x512xbf16>
    %c0_13 = arith.constant 0 : index
    %c0_14 = arith.constant 0 : index
    %16 = vector.load %arg3[%c0_13, %c0_14] : memref<512x1024xbf16, #tpu.memory_space<vmem>>, vector<512x1024xbf16>
    %cst_15 = arith.constant dense<0.000000e+00> : vector<8x1024xf32>
    %17 = tpu.matmul %15, %16, %cst_15 {dimension_numbers = #tpu.dot_dimension_numbers<[1], [0], [0], [1], [0, 0, 1, 1], [], []>} : vector<8x512xbf16>, vector<512x1024xbf16>, vector<8x1024xf32> -> vector<8x1024xf32>
    %18 = vector.broadcast %1 : vector<1x1024xf32> to vector<8x1024xf32>
    %19 = arith.addf %17, %18 : vector<8x1024xf32>
    %cst_16 = arith.constant 0.000000e+00 : f32
    %20 = vector.broadcast %cst_16 : f32 to vector<8x1024xf32>
    %21 = arith.maximumf %19, %20 : vector<8x1024xf32>
    %22 = arith.truncf %21 : vector<8x1024xf32> to vector<8x1024xbf16>
    %c0_17 = arith.constant 0 : index
    %c0_18 = arith.constant 0 : index
    %23 = vector.load %arg4[%c0_17, %c0_18] : memref<1024x128xbf16, #tpu.memory_space<vmem>>, vector<1024x128xbf16>
    %cst_19 = arith.constant dense<0.000000e+00> : vector<8x128xf32>
    %24 = tpu.matmul %22, %23, %cst_19 {dimension_numbers = #tpu.dot_dimension_numbers<[1], [0], [0], [1], [0, 0, 1, 1], [], []>} : vector<8x1024xbf16>, vector<1024x128xbf16>, vector<8x128xf32> -> vector<8x128xf32>
    %25 = vector.broadcast %2 : vector<1x128xf32> to vector<8x128xf32>
    %26 = arith.addf %24, %25 : vector<8x128xf32>
    %cst_20 = arith.constant 0.000000e+00 : f32
    %27 = vector.broadcast %cst_20 : f32 to vector<8x128xf32>
    %28 = arith.maximumf %26, %27 : vector<8x128xf32>
    %29 = arith.truncf %28 : vector<8x128xf32> to vector<8x128xbf16>
    %c0_21 = arith.constant 0 : index
    %c0_22 = arith.constant 0 : index
    %30 = vector.load %arg5[%c0_21, %c0_22] : memref<128x6xbf16, #tpu.memory_space<vmem>>, vector<128x6xbf16>
    %cst_23 = arith.constant dense<0.000000e+00> : vector<8x6xf32>
    %31 = tpu.matmul %29, %30, %cst_23 {dimension_numbers = #tpu.dot_dimension_numbers<[1], [0], [0], [1], [0, 0, 1, 1], [], []>} : vector<8x128xbf16>, vector<128x6xbf16>, vector<8x6xf32> -> vector<8x6xf32>
    %32 = vector.broadcast %3 : vector<1x6xf32> to vector<8x6xf32>
    %33 = arith.addf %31, %32 : vector<8x6xf32>
    %34 = arith.negf %33 : vector<8x6xf32>
    %35 = math.exp %34 : vector<8x6xf32>
    %cst_24 = arith.constant 1.000000e+00 : f32
    %36 = vector.broadcast %cst_24 : f32 to vector<8x6xf32>
    %37 = arith.addf %36, %35 : vector<8x6xf32>
    %38 = arith.divf %36, %37 : vector<8x6xf32>
    %c0_25 = arith.constant 0 : index
    %c0_26 = arith.constant 0 : index
    %39 = vector.load %arg7[%c0_25, %c0_26] : memref<8x6xf32, #tpu.memory_space<vmem>>, vector<8x6xf32>
    tpu.vector_store %arg7[%c0_25, %c0_26], %38 {strides = array<i32>} : memref<8x6xf32, #tpu.memory_space<vmem>>, vector<8x6xf32>,
    return
  }
}

</mosaic_0001>

<llo_original>
// kernel: signal_model_forward.1
$region0: #{signal_model_forward.1}
  #allocation0 [shape = 'u32[]', space=smem, size = 0x4, offset = 0x4, fixed_abs, tag = 'smem constant byte address 0x4 - core index']
  #allocation1 [shape = 'u32[144,128]{1,0:T(1,128)}', space=vmem, size = 0x12000, scoped, tag = 'internal scratch']
  %s0 = inlined_call_operand.hbm [shape: f32[8,8], index: 0, kind: input, shape index: {}]
  %s1 = inlined_call_operand.hbm [shape: f32[8,8], index: 1, kind: input, shape index: {}]
  %s2 = inlined_call_operand.vmem [shape: f32[16,512], index: 2, kind: input, shape index: {}]
  %s3 = inlined_call_operand.hbm [shape: bf16[512,1024], index: 3, kind: input, shape index: {}]
  %s4 = inlined_call_operand.hbm [shape: bf16[1024,128], index: 4, kind: input, shape index: {}]
  %s5 = inlined_call_operand.vmem [shape: bf16[128,6], index: 5, kind: input, shape index: {}]
  %s6 = inlined_call_operand.vmem [shape: f32[1,1670], index: 6, kind: input, shape index: {}]
  %s7 = inlined_call_operand.hbm [shape: f32[8,6], index: 7, kind: output, shape index: {}]
  %s8 = sld [smem:[#allocation0]]
  $region54: #{signal_model_forward.1} parent=0
    _
  %s10 = ssub.s32 1, %s8
  %s11 = scalar_select 0, %s10, %s8
  $region1: #{signal_model_forward.1} parent=0
    #allocation2 [shape = 'u8[4096]{0}', space=vmem, size = 0x1000, scoped, tag = 'input window, operand 0, single buffered']
    #allocation3 [shape = 's32[1]{0}', space=sflag, size = 0x4, scoped, tag = 'scoped memory for signal_model_forward.1']
    #allocation4 [shape = 's32[1]{0}', space=sflag, size = 0x4, scoped, tag = 'scoped memory for signal_model_forward.1']
    #allocation5 [shape = 'u8[4096]{0}', space=vmem, size = 0x1000, scoped, tag = 'input window, operand 1, single buffered']
    #allocation6 [shape = 's32[1]{0}', space=sflag, size = 0x4, scoped, tag = 'scoped memory for signal_model_forward.1']
    #allocation7 [shape = 'u8[1048576]{0}', space=vmem, size = 0x100000, scoped, tag = 'input window, operand 3, single buffered']
    #allocation8 [shape = 'u8[262144]{0}', space=vmem, size = 0x40000, scoped, tag = 'input window, operand 4, single buffered']
    #allocation9 [shape = 's32[1]{0}', space=sflag, size = 0x4, scoped, tag = 'scoped memory for signal_model_forward.1']
    #allocation10 [shape = 'u8[4096]{0}', space=vmem, size = 0x1000, scoped, tag = 'output window, operand 0, single buffered']
    %12 = vsyncpa [#allocation3], 0
    %13 = vsyncpa [#allocation6], 0
    %14 = vsyncpa [#allocation9], 0
    %15 = vsyncpa [#allocation4], 0
    // Predicated region
    $region2: #{signal_model_forward.1} parent=1 // pred_check
      _
    $region3: #{signal_model_forward.1} parent=1 // pred_check_branch
      %17 = sbr.rel (0) target = $region5
    $region4: #{signal_model_forward.1} parent=1 // pred_region
      %s19 = ssub.s32 128, 128
      %20 = vsyncadd [#allocation3], %s19
      %s22 = sshll.u32 [#allocation2], 4
      %s23 = int_to_ptr.vmem [resolvable:$true] %s22
      %25 = dma.hbm_to_vmem [thread:$0]  %s0, 128, %s23, [#allocation3]
    $region5: #{signal_model_forward.1} parent=1 // pred_fallthru
      _
    // Predicated region
    $region6: #{signal_model_forward.1} parent=1 // pred_check
      _
    $region7: #{signal_model_forward.1} parent=1 // pred_check_branch
      %27 = sbr.rel (0) target = $region9
    $region8: #{signal_model_forward.1} parent=1 // pred_region
      %s29 = ssub.s32 128, 128
      %30 = vsyncadd [#allocation6], %s29
      %s32 = sshll.u32 [#allocation5], 4
      %s33 = int_to_ptr.vmem [resolvable:$true] %s32
      %35 = dma.hbm_to_vmem [thread:$0]  %s1, 128, %s33, [#allocation6]
    $region9: #{signal_model_forward.1} parent=1 // pred_fallthru
      _
    // Predicated region
    $region10: #{signal_model_forward.1} parent=1 // pred_check
      _
    $region11: #{signal_model_forward.1} parent=1 // pred_check_branch
      %37 = sbr.rel (0) target = $region13
    $region12: #{signal_model_forward.1} parent=1 // pred_region
      _
    $region13: #{signal_model_forward.1} parent=1 // pred_fallthru
      _
    // Predicated region
    $region14: #{signal_model_forward.1} parent=1 // pred_check
      _
    $region15: #{signal_model_forward.1} parent=1 // pred_check_branch
      %39 = sbr.rel (0) target = $region17
    $region16: #{signal_model_forward.1} parent=1 // pred_region
      %s41 = ssub.s32 32768, 32768
      %42 = vsyncadd [#allocation6], %s41
      %s43 = sshll.u32 [#allocation7], 4
      %s44 = int_to_ptr.vmem [resolvable:$true] %s43
      %49 = dma.hbm_to_vmem [thread:$0]  %s3, 32768, %s44, [#allocation6], 512, 512, 32
    $region17: #{signal_model_forward.1} parent=1 // pred_fallthru
      _
    // Predicated region
    $region18: #{signal_model_forward.1} parent=1 // pred_check
      _
    $region19: #{signal_model_forward.1} parent=1 // pred_check_branch
      %51 = sbr.rel (0) target = $region21
    $region20: #{signal_model_forward.1} parent=1 // pred_region
      %s53 = ssub.s32 8192, 8192
      %54 = vsyncadd [#allocation9], %s53
      %s55 = sshll.u32 [#allocation8], 4
      %s56 = int_to_ptr.vmem [resolvable:$true] %s55
      %61 = dma.hbm_to_vmem [thread:$0]  %s4, 8192, %s56, [#allocation9], 64, 64, 4
    $region21: #{signal_model_forward.1} parent=1 // pred_fallthru
      _
    // Predicated region
    $region22: #{signal_model_forward.1} parent=1 // pred_check
      _
    $region23: #{signal_model_forward.1} parent=1 // pred_check_branch
      %63 = sbr.rel (0) target = $region25
    $region24: #{signal_model_forward.1} parent=1 // pred_region
      _
    $region25: #{signal_model_forward.1} parent=1 // pred_fallthru
      _
    // Predicated region
    $region26: #{signal_model_forward.1} parent=1 // pred_check
      _
    $region27: #{signal_model_forward.1} parent=1 // pred_check_branch
      %65 = sbr.rel (0) target = $region29
    $region28: #{signal_model_forward.1} parent=1 // pred_region
      _
    $region29: #{signal_model_forward.1} parent=1 // pred_fallthru
      _
    // Predicated region
    $region30: #{signal_model_forward.1} parent=1 // pred_check
      _
    $region31: #{signal_model_forward.1} parent=1 // pred_check_branch
      %67 = sbr.rel (0) target = $region33
    $region32: #{signal_model_forward.1} parent=1 // pred_region
      %68 = dma.done [#allocation3], 128
    $region33: #{signal_model_forward.1} parent=1 // pred_fallthru
      _
    // Predicated region
    $region34: #{signal_model_forward.1} parent=1 // pred_check
      _
    $region35: #{signal_model_forward.1} parent=1 // pred_check_branch
      %70 = sbr.rel (0) target = $region37
    $region36: #{signal_model_forward.1} parent=1 // pred_region
      %71 = dma.done [#allocation6], 128
    $region37: #{signal_model_forward.1} parent=1 // pred_fallthru
      _
    // Predicated region
    $region38: #{signal_model_forward.1} parent=1 // pred_check
      _
    $region39: #{signal_model_forward.1} parent=1 // pred_check_branch
      %73 = sbr.rel (0) target = $region41
    $region40: #{signal_model_forward.1} parent=1 // pred_region
      %74 = dma.done [#allocation6], 32768
    $region41: #{signal_model_forward.1} parent=1 // pred_fallthru
      _
    // Predicated region
    $region42: #{signal_model_forward.1} parent=1 // pred_check
      _
    $region43: #{signal_model_forward.1} parent=1 // pred_check_branch
      %76 = sbr.rel (0) target = $region45
    $region44: #{signal_model_forward.1} parent=1 // pred_region
      %77 = dma.done [#allocation9], 8192
    $region45: #{signal_model_forward.1} parent=1 // pred_fallthru
      _
    %v79 = vld [vmem:[%s6] sm:$0xf]
    %v80 = vld [vmem:[%s6 + $0x4] sm:$0xff]
    %v81 = vld [vmem:[%s6 + $0xc] sm:$0x1]
    %v82 = vld [vmem:[%s6 + $0xd] sm:$0x1]
    %v83 = vld [vmem:[#allocation2] sm:$0xff]
    %v84 = vld [vmem:[%s2] sm:$0xff]
    %v85 = vld [vmem:[%s2 + $0x8] sm:$0xff]
    %v86 = vld [vmem:[%s2 + $0x10] sm:$0xff]
    %v87 = vld [vmem:[%s2 + $0x18] sm:$0xff]
    %v88 = vld [vmem:[#allocation5] sm:$0xff]
    %v89 = vld [vmem:[%s2 + $0x20] sm:$0xff]
    %v90 = vld [vmem:[%s2 + $0x28] sm:$0xff]
    %v91 = vld [vmem:[%s2 + $0x30] sm:$0xff]
    %v92 = vld [vmem:[%s2 + $0x38] sm:$0xff]
    %vm93 = vcmask 64512
    %v95 = vsel %vm93, %v88, 0
    %97 = vmatprep.subr.mxu0 %v90
    %98 = vmatpush1.msra.mxu0 %v89
    %99 = vmatprep.subr.mxu0 0.0
    %100 = vmatpush1.msra.mxu0 0.0
    %101 = vmatprep.subr.mxu0 0.0
    %102 = vmatpush1.msra.mxu0 0.0
    %103 = vmatprep.subr.mxu0 0.0
    %104 = vmatpush1.msra.mxu0 0.0
    %105 = vmatprep.subr.mxu0 0.0
    %106 = vmatpush1.msra.mxu0 0.0
    %107 = vmatprep.subr.mxu0 0.0
    %108 = vmatpush1.msra.mxu0 0.0
    %109 = vmatprep.subr.mxu0 0.0
    %110 = vmatpush1.msra.mxu0 0.0
    %111 = vmatprep.subr.mxu0 0.0
    %112 = vmatpush1.msra.mxu0 0.0
    %113 = vmatprep.subr.mxu0 0.0
    %114 = vmatpush1.msra.mxu0 0.0
    %115 = vmatprep.subr.mxu0 0.0
    %116 = vmatpush1.msra.mxu0 0.0
    %117 = vmatprep.subr.mxu0 0.0
    %118 = vmatpush1.msra.mxu0 0.0
    %119 = vmatprep.subr.mxu0 0.0
    %120 = vmatpush1.msra.mxu0 0.0
    %121 = vmatprep.subr.mxu0 0.0
    %122 = vmatpush1.msra.mxu0 0.0
    %123 = vmatprep.subr.mxu0 0.0
    %124 = vmatpush1.msra.mxu0 0.0
    %125 = vmatprep.subr.mxu0 0.0
    %126 = vmatpush1.msra.mxu0 0.0
    %127 = vmatprep.subr.mxu0 0.0
    %128 = vmatpush1.msra.mxu0 0.0
    %129 = vmatprep.subr.mxu0 0.0
    %130 = vmatpush1.msra.mxu0 0.0
    %131 = vmatprep.subr.mxu0 0.0
    %132 = vmatpush1.msra.mxu0 0.0
    %133 = vmatprep.subr.mxu0 0.0
    %134 = vmatpush1.msra.mxu0 0.0
    %135 = vmatprep.subr.mxu0 0.0
    %136 = vmatpush1.msra.mxu0 0.0
    %137 = vmatprep.subr.mxu0 0.0
    %138 = vmatpush1.msra.mxu0 0.0
    %139 = vmatprep.subr.mxu0 0.0
    %140 = vmatpush1.msra.mxu0 0.0
    %141 = vmatprep.subr.mxu0 0.0
    %142 = vmatpush1.msra.mxu0 0.0
    %143 = vmatprep.subr.mxu0 0.0
    %144 = vmatpush1.msra.mxu0 0.0
    %145 = vmatprep.subr.mxu0 0.0
    %146 = vmatpush1.msra.mxu0 0.0
    %147 = vmatprep.subr.mxu0 0.0
    %148 = vmatpush1.msra.mxu0 0.0
    %149 = vmatprep.subr.mxu0 0.0
    %150 = vmatpush1.msra.mxu0 0.0
    %151 = vmatprep.subr.mxu0 0.0
    %152 = vmatpush1.msra.mxu0 0.0
    %153 = vmatprep.subr.mxu0 0.0
    %154 = vmatpush1.msra.mxu0 0.0
    %155 = vmatprep.subr.mxu0 0.0
    %156 = vmatpush1.msra.mxu0 0.0
    %157 = vmatprep.subr.mxu0 0.0
    %158 = vmatpush1.msra.mxu0 0.0
    %159 = vmatprep.subr.mxu0 0.0
    %160 = vmatpush1.msra.mxu0 0.0
    %161 = vmatprep.mubr.f32.mxu0 0.0
    %162 = vmatmul.mubr.f32.gmra.mrb[0].mxu0 %v95
    %v163 = vpop.f32.mrb[0].mxu0
    %v164 = vadd.f32 0.0, %v163
    %v165 = vpop.f32.mrb[0].mxu0
    %v166 = vadd.f32 0.0, %v165
    %167 = vdwg.mxu0
    %168 = vmatprep.subr.mxu0 %v92
    %169 = vmatpush1.msra.mxu0 %v91
    %170 = vmatprep.subr.mxu0 0.0
    %171 = vmatpush1.msra.mxu0 0.0
    %172 = vmatprep.subr.mxu0 0.0
    %173 = vmatpush1.msra.mxu0 0.0
    %174 = vmatprep.subr.mxu0 0.0
    %175 = vmatpush1.msra.mxu0 0.0
    %176 = vmatprep.subr.mxu0 0.0
    %177 = vmatpush1.msra.mxu0 0.0
    %178 = vmatprep.subr.mxu0 0.0
    %179 = vmatpush1.msra.mxu0 0.0
    %180 = vmatprep.subr.mxu0 0.0
    %181 = vmatpush1.msra.mxu0 0.0
    %182 = vmatprep.subr.mxu0 0.0
    %183 = vmatpush1.msra.mxu0 0.0
    %184 = vmatprep.subr.mxu0 0.0
    %185 = vmatpush1.msra.mxu0 0.0
    %186 = vmatprep.subr.mxu0 0.0
    %187 = vmatpush1.msra.mxu0 0.0
    %188 = vmatprep.subr.mxu0 0.0
    %189 = vmatpush1.msra.mxu0 0.0
    %190 = vmatprep.subr.mxu0 0.0
    %191 = vmatpush1.msra.mxu0 0.0
    %192 = vmatprep.subr.mxu0 0.0
    %193 = vmatpush1.msra.mxu0 0.0
    %194 = vmatprep.subr.mxu0 0.0
    %195 = vmatpush1.msra.mxu0 0.0
    %196 = vmatprep.subr.mxu0 0.0
    %197 = vmatpush1.msra.mxu0 0.0
    %198 = vmatprep.subr.mxu0 0.0
    %199 = vmatpush1.msra.mxu0 0.0
    %200 = vmatprep.subr.mxu0 0.0
    %201 = vmatpush1.msra.mxu0 0.0
    %202 = vmatprep.subr.mxu0 0.0
    %203 = vmatpush1.msra.mxu0 0.0
    %204 = vmatprep.subr.mxu0 0.0
    %205 = vmatpush1.msra.mxu0 0.0
    %206 = vmatprep.subr.mxu0 0.0
    %207 = vmatpush1.msra.mxu0 0.0
    %208 = vmatprep.subr.mxu0 0.0
    %209 = vmatpush1.msra.mxu0 0.0
    %210 = vmatprep.subr.mxu0 0.0
    %211 = vmatpush1.msra.mxu0 0.0
    %212 = vmatprep.subr.mxu0 0.0
    %213 = vmatpush1.msra.mxu0 0.0
    %214 = vmatprep.subr.mxu0 0.0
    %215 = vmatpush1.msra.mxu0 0.0
    %216 = vmatprep.subr.mxu0 0.0
    %217 = vmatpush1.msra.mxu0 0.0
    %218 = vmatprep.subr.mxu0 0.0
    %219 = vmatpush1.msra.mxu0 0.0
    %220 = vmatprep.subr.mxu0 0.0
    %221 = vmatpush1.msra.mxu0 0.0
    %222 = vmatprep.subr.mxu0 0.0
    %223 = vmatpush1.msra.mxu0 0.0
    %224 = vmatprep.subr.mxu0 0.0
    %225 = vmatpush1.msra.mxu0 0.0
    %226 = vmatprep.subr.mxu0 0.0
    %227 = vmatpush1.msra.mxu0 0.0
    %228 = vmatprep.subr.mxu0 0.0
    %229 = vmatpush1.msra.mxu0 0.0
    %230 = vmatprep.subr.mxu0 0.0
    %231 = vmatpush1.msra.mxu0 0.0
    %232 = vmatprep.mubr.f32.mxu0 0.0
    %233 = vmatmul.mubr.f32.gmra.mrb[0].mxu0 %v95
    %v234 = vpop.f32.mrb[0].mxu0
    %v235 = vadd.f32 0.0, %v234
    %v236 = vpop.f32.mrb[0].mxu0
    %v237 = vadd.f32 0.0, %v236
    %238 = vdwg.mxu0
    %v240 = vsel %vm93, %v83, 0
    %242 = vmatprep.subr.mxu0 %v85
    %243 = vmatpush1.msra.mxu0 %v84
    %244 = vmatprep.subr.mxu0 0.0
    %245 = vmatpush1.msra.mxu0 0.0
    %246 = vmatprep.subr.mxu0 0.0
    %247 = vmatpush1.msra.mxu0 0.0
    %248 = vmatprep.subr.mxu0 0.0
    %249 = vmatpush1.msra.mxu0 0.0
    %250 = vmatprep.subr.mxu0 0.0
    %251 = vmatpush1.msra.mxu0 0.0
    %252 = vmatprep.subr.mxu0 0.0
    %253 = vmatpush1.msra.mxu0 0.0
    %254 = vmatprep.subr.mxu0 0.0
    %255 = vmatpush1.msra.mxu0 0.0
    %256 = vmatprep.subr.mxu0 0.0
    %257 = vmatpush1.msra.mxu0 0.0
    %258 = vmatprep.subr.mxu0 0.0
    %259 = vmatpush1.msra.mxu0 0.0
    %260 = vmatprep.subr.mxu0 0.0
    %261 = vmatpush1.msra.mxu0 0.0
    %262 = vmatprep.subr.mxu0 0.0
    %263 = vmatpush1.msra.mxu0 0.0
    %264 = vmatprep.subr.mxu0 0.0
    %265 = vmatpush1.msra.mxu0 0.0
    %266 = vmatprep.subr.mxu0 0.0
    %267 = vmatpush1.msra.mxu0 0.0
    %268 = vmatprep.subr.mxu0 0.0
    %269 = vmatpush1.msra.mxu0 0.0
    %270 = vmatprep.subr.mxu0 0.0
    %271 = vmatpush1.msra.mxu0 0.0
    %272 = vmatprep.subr.mxu0 0.0
    %273 = vmatpush1.msra.mxu0 0.0
    %274 = vmatprep.subr.mxu0 0.0
    %275 = vmatpush1.msra.mxu0 0.0
    %276 = vmatprep.subr.mxu0 0.0
    %277 = vmatpush1.msra.mxu0 0.0
    %278 = vmatprep.subr.mxu0 0.0
    %279 = vmatpush1.msra.mxu0 0.0
    %280 = vmatprep.subr.mxu0 0.0
    %281 = vmatpush1.msra.mxu0 0.0
    %282 = vmatprep.subr.mxu0 0.0
    %283 = vmatpush1.msra.mxu0 0.0
    %284 = vmatprep.subr.mxu0 0.0
    %285 = vmatpush1.msra.mxu0 0.0
    %286 = vmatprep.subr.mxu0 0.0
    %287 = vmatpush1.msra.mxu0 0.0
    %288 = vmatprep.subr.mxu0 0.0
    %289 = vmatpush1.msra.mxu0 0.0
    %290 = vmatprep.subr.mxu0 0.0
    %291 = vmatpush1.msra.mxu0 0.0
    %292 = vmatprep.subr.mxu0 0.0
    %293 = vmatpush1.msra.mxu0 0.0
    %294 = vmatprep.subr.mxu0 0.0
    %295 = vmatpush1.msra.mxu0 0.0
    %296 = vmatprep.subr.mxu0 0.0
    %297 = vmatpush1.msra.mxu0 0.0
    %298 = vmatprep.subr.mxu0 0.0
    %299 = vmatpush1.msra.mxu0 0.0
    %300 = vmatprep.subr.mxu0 0.0
    %301 = vmatpush1.msra.mxu0 0.0
    %302 = vmatprep.subr.mxu0 0.0
    %303 = vmatpush1.msra.mxu0 0.0
    %304 = vmatprep.subr.mxu0 0.0
    %305 = vmatpush1.msra.mxu0 0.0
    %306 = vmatprep.mubr.f32.mxu0 0.0
    %307 = vmatmul.mubr.f32.gmra.mrb[0].mxu0 %v240
    %v308 = vpop.f32.mrb[0].mxu0
    %v309 = vadd.f32 %v164, %v308
    %v310 = vpop.f32.mrb[0].mxu0
    %v311 = vadd.f32 %v166, %v310
    %312 = vdwg.mxu0
    %313 = vmatprep.subr.mxu0 %v87
    %314 = vmatpush1.msra.mxu0 %v86
    %315 = vmatprep.subr.mxu0 0.0
    %316 = vmatpush1.msra.mxu0 0.0
    %317 = vmatprep.subr.mxu0 0.0
    %318 = vmatpush1.msra.mxu0 0.0
    %319 = vmatprep.subr.mxu0 0.0
    %320 = vmatpush1.msra.mxu0 0.0
    %321 = vmatprep.subr.mxu0 0.0
    %322 = vmatpush1.msra.mxu0 0.0
    %323 = vmatprep.subr.mxu0 0.0
    %324 = vmatpush1.msra.mxu0 0.0
    %325 = vmatprep.subr.mxu0 0.0
    %326 = vmatpush1.msra.mxu0 0.0
    %327 = vmatprep.subr.mxu0 0.0
    %328 = vmatpush1.msra.mxu0 0.0
    %329 = vmatprep.subr.mxu0 0.0
    %330 = vmatpush1.msra.mxu0 0.0
    %331 = vmatprep.subr.mxu0 0.0
    %332 = vmatpush1.msra.mxu0 0.0
    %333 = vmatprep.subr.mxu0 0.0
    %334 = vmatpush1.msra.mxu0 0.0
    %335 = vmatprep.subr.mxu0 0.0
    %336 = vmatpush1.msra.mxu0 0.0
    %337 = vmatprep.subr.mxu0 0.0
    %338 = vmatpush1.msra.mxu0 0.0
    %339 = vmatprep.subr.mxu0 0.0
    %340 = vmatpush1.msra.mxu0 0.0
    %341 = vmatprep.subr.mxu0 0.0
    %342 = vmatpush1.msra.mxu0 0.0
    %343 = vmatprep.subr.mxu0 0.0
    %344 = vmatpush1.msra.mxu0 0.0
    %345 = vmatprep.subr.mxu0 0.0
    %346 = vmatpush1.msra.mxu0 0.0
    %347 = vmatprep.subr.mxu0 0.0
    %348 = vmatpush1.msra.mxu0 0.0
    %349 = vmatprep.subr.mxu0 0.0
    %350 = vmatpush1.msra.mxu0 0.0
    %351 = vmatprep.subr.mxu0 0.0
    %352 = vmatpush1.msra.mxu0 0.0
    %353 = vmatprep.subr.mxu0 0.0
    %354 = vmatpush1.msra.mxu0 0.0
    %355 = vmatprep.subr.mxu0 0.0
    %356 = vmatpush1.msra.mxu0 0.0
    %357 = vmatprep.subr.mxu0 0.0
    %358 = vmatpush1.msra.mxu0 0.0
    %359 = vmatprep.subr.mxu0 0.0
    %360 = vmatpush1.msra.mxu0 0.0
    %361 = vmatprep.subr.mxu0 0.0
    %362 = vmatpush1.msra.mxu0 0.0
    %363 = vmatprep.subr.mxu0 0.0
    %364 = vmatpush1.msra.mxu0 0.0
    %365 = vmatprep.subr.mxu0 0.0
    %366 = vmatpush1.msra.mxu0 0.0
    %367 = vmatprep.subr.mxu0 0.0
    %368 = vmatpush1.msra.mxu0 0.0
    %369 = vmatprep.subr.mxu0 0.0
    %370 = vmatpush1.msra.mxu0 0.0
    %371 = vmatprep.subr.mxu0 0.0
    %372 = vmatpush1.msra.mxu0 0.0
    %373 = vmatprep.subr.mxu0 0.0
    %374 = vmatpush1.msra.mxu0 0.0
    %375 = vmatprep.subr.mxu0 0.0
    %376 = vmatpush1.msra.mxu0 0.0
    %377 = vmatprep.mubr.f32.mxu0 0.0
    %378 = vmatmul.mubr.f32.gmra.mrb[0].mxu0 %v240
    %v379 = vpop.f32.mrb[0].mxu0
    %v380 = vadd.f32 %v235, %v379
    %v381 = vpop.f32.mrb[0].mxu0
    %v382 = vadd.f32 %v237, %v381
    %383 = vdwg.mxu0
    %v385 = vlaneseq
    %v386 = vshrl.u32 %v385, 7
    %v387 = vsub.s32 0, %v386
    %v388 = vrot.slane %v79, %v387
    %v389 = vlaneseq
    %v390 = vshrl.u32 %v389, 7
    %v391 = vsub.s32 1, %v390
    %v392 = vrot.slane %v79, %v391
    %v393 = vlaneseq
    %v394 = vshrl.u32 %v393, 7
    %v395 = vsub.s32 2, %v394
    %v396 = vrot.slane %v79, %v395
    %v397 = vlaneseq
    %v398 = vshrl.u32 %v397, 7
    %v399 = vsub.s32 3, %v398
    %v400 = vrot.slane %v79, %v399
    %v405 = vadd.f32 %v309, %v388
    %v406 = vadd.f32 %v311, %v392
    %v407 = vadd.f32 %v380, %v396
    %v408 = vadd.f32 %v382, %v400
    %v409 = vmax.f32 %v405, 0.0
    %v410 = vmax.f32 %v406, 0.0
    %v411 = vmax.f32 %v407, 0.0
    %v412 = vmax.f32 %v408, 0.0
    %v413 = vpack.c.bf16 %v409, %v409
    %v414 = vpack.c.bf16 %v410, %v410
    %v415 = vpack.c.bf16 %v411, %v411
    %v416 = vpack.c.bf16 %v412, %v412
    %v417 = vld [vmem:[#allocation7] sm:$0xff]
    %v418 = vld [vmem:[#allocation7 + $0x8] sm:$0xff]
    %v419 = vld [vmem:[#allocation7 + $0x10] sm:$0xff]
    %v420 = vld [vmem:[#allocation7 + $0x18] sm:$0xff]
    %v421 = vld [vmem:[#allocation7 + $0x20] sm:$0xff]
    %v422 = vld [vmem:[#allocation7 + $0x28] sm:$0xff]
    %v423 = vld [vmem:[#allocation7 + $0x30] sm:$0xff]
    %v424 = vld [vmem:[#allocation7 + $0x38] sm:$0xff]
    %v425 = vld [vmem:[#allocation7 + $0x40] sm:$0xff]
    %v426 = vld [vmem:[#allocation7 + $0x48] sm:$0xff]
    %v427 = vld [vmem:[#allocation7 + $0x50] sm:$0xff]
    %v428 = vld [vmem:[#allocation7 + $0x58] sm:$0xff]
    %v429 = vld [vmem:[#allocation7 + $0x60] sm:$0xff]
    %v430 = vld [vmem:[#allocation7 + $0x68] sm:$0xff]
    %v431 = vld [vmem:[#allocation7 + $0x70] sm:$0xff]
    %v432 = vld [vmem:[#allocation7 + $0x78] sm:$0xff]
    %v433 = vld [vmem:[#allocation7 + $0x80] sm:$0xff]
    %v434 = vld [vmem:[#allocation7 + $0x88] sm:$0xff]
    %v435 = vld [vmem:[#allocation7 + $0x90] sm:$0xff]
    %v436 = vld [vmem:[#allocation7 + $0x98] sm:$0xff]
    %v437 = vld [vmem:[#allocation7 + $0xa0] sm:$0xff]
    %v438 = vld [vmem:[#allocation7 + $0xa8] sm:$0xff]
    %v439 = vld [vmem:[#allocation7 + $0xb0] sm:$0xff]
    %v440 = vld [vmem:[#allocation7 + $0xb8] sm:$0xff]
    %v441 = vld [vmem:[#allocation7 + $0xc0] sm:$0xff]
    %v442 = vld [vmem:[#allocation7 + $0xc8] sm:$0xff]
    %v443 = vld [vmem:[#allocation7 + $0xd0] sm:$0xff]
    %v444 = vld [vmem:[#allocation7 + $0xd8] sm:$0xff]
    %v445 = vld [vmem:[#allocation7 + $0xe0] sm:$0xff]
    %v446 = vld [vmem:[#allocation7 + $0xe8] sm:$0xff]
    %v447 = vld [vmem:[#allocation7 + $0xf0] sm:$0xff]
    %v448 = vld [vmem:[#allocation7 + $0xf8] sm:$0xff]
    %v449 = vld [vmem:[#allocation7 + $0x100] sm:$0xff]
    %v450 = vld [vmem:[#allocation7 + $0x108] sm:$0xff]
    %v451 = vld [vmem:[#allocation7 + $0x110] sm:$0xff]
    %v452 = vld [vmem:[#allocation7 + $0x118] sm:$0xff]
    %v453 = vld [vmem:[#allocation7 + $0x120] sm:$0xff]
    %v454 = vld [vmem:[#allocation7 + $0x128] sm:$0xff]
    %v455 = vld [vmem:[#allocation7 + $0x130] sm:$0xff]
    %v456 = vld [vmem:[#allocation7 + $0x138] sm:$0xff]
    %v457 = vld [vmem:[#allocation7 + $0x140] sm:$0xff]
    %v458 = vld [vmem:[#allocation7 + $0x148] sm:$0xff]
    %v459 = vld [vmem:[#allocation7 + $0x150] sm:$0xff]
    %v460 = vld [vmem:[#allocation7 + $0x158] sm:$0xff]
    %v461 = vld [vmem:[#allocation7 + $0x160] sm:$0xff]
    %v462 = vld [vmem:[#allocation7 + $0x168] sm:$0xff]
    %v463 = vld [vmem:[#allocation7 + $0x170] sm:$0xff]
    %v464 = vld [vmem:[#allocation7 + $0x178] sm:$0xff]
    %v465 = vld [vmem:[#allocation7 + $0x180] sm:$0xff]
    %v466 = vld [vmem:[#allocation7 + $0x188] sm:$0xff]
    %v467 = vld [vmem:[#allocation7 + $0x190] sm:$0xff]
    %v468 = vld [vmem:[#allocation7 + $0x198] sm:$0xff]
    %v469 = vld [vmem:[#allocation7 + $0x1a0] sm:$0xff]
    %v470 = vld [vmem:[#allocation7 + $0x1a8] sm:$0xff]
    %v471 = vld [vmem:[#allocation7 + $0x1b0] sm:$0xff]
    %v472 = vld [vmem:[#allocation7 + $0x1b8] sm:$0xff]
    %v473 = vld [vmem:[#allocation7 + $0x1c0] sm:$0xff]
    %v474 = vld [vmem:[#allocation7 + $0x1c8] sm:$0xff]
    %v475 = vld [vmem:[#allocation7 + $0x1d0] sm:$0xff]
    %v476 = vld [vmem:[#allocation7 + $0x1d8] sm:$0xff]
    %v477 = vld [vmem:[#allocation7 + $0x1e0] sm:$0xff]
    %v478 = vld [vmem:[#allocation7 + $0x1e8] sm:$0xff]
    %v479 = vld [vmem:[#allocation7 + $0x1f0] sm:$0xff]
    %v480 = vld [vmem:[#allocation7 + $0x1f8] sm:$0xff]
    %v481 = vld [vmem:[#allocation7 + $0x200] sm:$0xff]
    %v482 = vld [vmem:[#allocation7 + $0x208] sm:$0xff]
    %v483 = vld [vmem:[#allocation7 + $0x210] sm:$0xff]
    %v484 = vld [vmem:[#allocation7 + $0x218] sm:$0xff]
    %v485 = vld [vmem:[#allocation7 + $0x220] sm:$0xff]
    %v486 = vld [vmem:[#allocation7 + $0x228] sm:$0xff]
    %v487 = vld [vmem:[#allocation7 + $0x230] sm:$0xff]
    %v488 = vld [vmem:[#allocation7 + $0x238] sm:$0xff]
    %v489 = vld [vmem:[#allocation7 + $0x240] sm:$0xff]
    %v490 = vld [vmem:[#allocation7 + $0x248] sm:$0xff]
    %v491 = vld [vmem:[#allocation7 + $0x250] sm:$0xff]
    %v492 = vld [vmem:[#allocation7 + $0x258] sm:$0xff]
    %v493 = vld [vmem:[#allocation7 + $0x260] sm:$0xff]
    %v494 = vld [vmem:[#allocation7 + $0x268] sm:$0xff]
    %v495 = vld [vmem:[#allocation7 + $0x270] sm:$0xff]
    %v496 = vld [vmem:[#allocation7 + $0x278] sm:$0xff]
    %v497 = vld [vmem:[#allocation7 + $0x280] sm:$0xff]
    %v498 = vld [vmem:[#allocation7 + $0x288] sm:$0xff]
    %v499 = vld [vmem:[#allocation7 + $0x290] sm:$0xff]
    %v500 = vld [vmem:[#allocation7 + $0x298] sm:$0xff]
    %v501 = vld [vmem:[#allocation7 + $0x2a0] sm:$0xff]
    %v502 = vld [vmem:[#allocation7 + $0x2a8] sm:$0xff]
    %v503 = vld [vmem:[#allocation7 + $0x2b0] sm:$0xff]
    %v504 = vld [vmem:[#allocation7 + $0x2b8] sm:$0xff]
    %v505 = vld [vmem:[#allocation7 + $0x2c0] sm:$0xff]
    %v506 = vld [vmem:[#allocation7 + $0x2c8] sm:$0xff]
    %v507 = vld [vmem:[#allocation7 + $0x2d0] sm:$0xff]
    %v508 = vld [vmem:[#allocation7 + $0x2d8] sm:$0xff]
    %v509 = vld [vmem:[#allocation7 + $0x2e0] sm:$0xff]
    %v510 = vld [vmem:[#allocation7 + $0x2e8] sm:$0xff]
    %v511 = vld [vmem:[#allocation7 + $0x2f0] sm:$0xff]
    %v512 = vld [vmem:[#allocation7 + $0x2f8] sm:$0xff]
    %v513 = vld [vmem:[#allocation7 + $0x300] sm:$0xff]
    %v514 = vld [vmem:[#allocation7 + $0x308] sm:$0xff]
    %v515 = vld [vmem:[#allocation7 + $0x310] sm:$0xff]
    %v516 = vld [vmem:[#allocation7 + $0x318] sm:$0xff]
    %v517 = vld [vmem:[#allocation7 + $0x320] sm:$0xff]
    %v518 = vld [vmem:[#allocation7 + $0x328] sm:$0xff]
    %v519 = vld [vmem:[#allocation7 + $0x330] sm:$0xff]
    %v520 = vld [vmem:[#allocation7 + $0x338] sm:$0xff]
    %v521 = vld [vmem:[#allocation7 + $0x340] sm:$0xff]
    %v522 = vld [vmem:[#allocation7 + $0x348] sm:$0xff]
    %v523 = vld [vmem:[#allocation7 + $0x350] sm:$0xff]
    %v524 = vld [vmem:[#allocation7 + $0x358] sm:$0xff]
    %v525 = vld [vmem:[#allocation7 + $0x360] sm:$0xff]
    %v526 = vld [vmem:[#allocation7 + $0x368] sm:$0xff]
    %v527 = vld [vmem:[#allocation7 + $0x370] sm:$0xff]
    %v528 = vld [vmem:[#allocation7 + $0x378] sm:$0xff]
    %v529 = vld [vmem:[#allocation7 + $0x380] sm:$0xff]
    %v530 = vld [vmem:[#allocation7 + $0x388] sm:$0xff]
    %v531 = vld [vmem:[#allocation7 + $0x390] sm:$0xff]
    %v532 = vld [vmem:[#allocation7 + $0x398] sm:$0xff]
    %v533 = vld [vmem:[#allocation7 + $0x3a0] sm:$0xff]
    %v534 = vld [vmem:[#allocation7 + $0x3a8] sm:$0xff]
    %v535 = vld [vmem:[#allocation7 + $0x3b0] sm:$0xff]
    %v536 = vld [vmem:[#allocation7 + $0x3b8] sm:$0xff]
    %v537 = vld [vmem:[#allocation7 + $0x3c0] sm:$0xff]
    %v538 = vld [vmem:[#allocation7 + $0x3c8] sm:$0xff]
    %v539 = vld [vmem:[#allocation7 + $0x3d0] sm:$0xff]
    %v540 = vld [vmem:[#allocation7 + $0x3d8] sm:$0xff]
    %v541 = vld [vmem:[#allocation7 + $0x3e0] sm:$0xff]
    %v542 = vld [vmem:[#allocation7 + $0x3e8] sm:$0xff]
    %v543 = vld [vmem:[#allocation7 + $0x3f0] sm:$0xff]
    %v544 = vld [vmem:[#allocation7 + $0x3f8] sm:$0xff]
    %v545 = vld [vmem:[#allocation7 + $0x400] sm:$0xff]
    %v546 = vld [vmem:[#allocation7 + $0x408] sm:$0xff]
    %v547 = vld [vmem:[#allocation7 + $0x410] sm:$0xff]
    %v548 = vld [vmem:[#allocation7 + $0x418] sm:$0xff]
    %v549 = vld [vmem:[#allocation7 + $0x420] sm:$0xff]
    %v550 = vld [vmem:[#allocation7 + $0x428] sm:$0xff]
    %v551 = vld [vmem:[#allocation7 + $0x430] sm:$0xff]
    %v552 = vld [vmem:[#allocation7 + $0x438] sm:$0xff]
    %v553 = vld [vmem:[#allocation7 + $0x440] sm:$0xff]
    %v554 = vld [vmem:[#allocation7 + $0x448] sm:$0xff]
    %v555 = vld [vmem:[#allocation7 + $0x450] sm:$0xff]
    %v556 = vld [vmem:[#allocation7 + $0x458] sm:$0xff]
    %v557 = vld [vmem:[#allocation7 + $0x460] sm:$0xff]
    %v558 = vld [vmem:[#allocation7 + $0x468] sm:$0xff]
    %v559 = vld [vmem:[#allocation7 + $0x470] sm:$0xff]
    %v560 = vld [vmem:[#allocation7 + $0x478] sm:$0xff]
    %v561 = vld [vmem:[#allocation7 + $0x480] sm:$0xff]
    %v562 = vld [vmem:[#allocation7 + $0x488] sm:$0xff]
    %v563 = vld [vmem:[#allocation7 + $0x490] sm:$0xff]
    %v564 = vld [vmem:[#allocation7 + $0x498] sm:$0xff]
    %v565 = vld [vmem:[#allocation7 + $0x4a0] sm:$0xff]
    %v566 = vld [vmem:[#allocation7 + $0x4a8] sm:$0xff]
    %v567 = vld [vmem:[#allocation7 + $0x4b0] sm:$0xff]
    %v568 = vld [vmem:[#allocation7 + $0x4b8] sm:$0xff]
    %v569 = vld [vmem:[#allocation7 + $0x4c0] sm:$0xff]
    %v570 = vld [vmem:[#allocation7 + $0x4c8] sm:$0xff]
    %v571 = vld [vmem:[#allocation7 + $0x4d0] sm:$0xff]
    %v572 = vld [vmem:[#allocation7 + $0x4d8] sm:$0xff]
    %v573 = vld [vmem:[#allocation7 + $0x4e0] sm:$0xff]
    %v574 = vld [vmem:[#allocation7 + $0x4e8] sm:$0xff]
    %v575 = vld [vmem:[#allocation7 + $0x4f0] sm:$0xff]
    %v576 = vld [vmem:[#allocation7 + $0x4f8] sm:$0xff]
    %v577 = vld [vmem:[#allocation7 + $0x500] sm:$0xff]
    %v578 = vld [vmem:[#allocation7 + $0x508] sm:$0xff]
    %v579 = vld [vmem:[#allocation7 + $0x510] sm:$0xff]
    %v580 = vld [vmem:[#allocation7 + $0x518] sm:$0xff]
    %v581 = vld [vmem:[#allocation7 + $0x520] sm:$0xff]
    %v582 = vld [vmem:[#allocation7 + $0x528] sm:$0xff]
    %v583 = vld [vmem:[#allocation7 + $0x530] sm:$0xff]
    %v584 = vld [vmem:[#allocation7 + $0x538] sm:$0xff]
    %v585 = vld [vmem:[#allocation7 + $0x540] sm:$0xff]
    %v586 = vld [vmem:[#allocation7 + $0x548] sm:$0xff]
    %v587 = vld [vmem:[#allocation7 + $0x550] sm:$0xff]
    %v588 = vld [vmem:[#allocation7 + $0x558] sm:$0xff]
    %v589 = vld [vmem:[#allocation7 + $0x560] sm:$0xff]
    %v590 = vld [vmem:[#allocation7 + $0x568] sm:$0xff]
    %v591 = vld [vmem:[#allocation7 + $0x570] sm:$0xff]
    %v592 = vld [vmem:[#allocation7 + $0x578] sm:$0xff]
    %v593 = vld [vmem:[#allocation7 + $0x580] sm:$0xff]
    %v594 = vld [vmem:[#allocation7 + $0x588] sm:$0xff]
    %v595 = vld [vmem:[#allocation7 + $0x590] sm:$0xff]
    %v596 = vld [vmem:[#allocation7 + $0x598] sm:$0xff]
    %v597 = vld [vmem:[#allocation7 + $0x5a0] sm:$0xff]
    %v598 = vld [vmem:[#allocation7 + $0x5a8] sm:$0xff]
    %v599 = vld [vmem:[#allocation7 + $0x5b0] sm:$0xff]
    %v600 = vld [vmem:[#allocation7 + $0x5b8] sm:$0xff]
    %v601 = vld [vmem:[#allocation7 + $0x5c0] sm:$0xff]
    %v602 = vld [vmem:[#allocation7 + $0x5c8] sm:$0xff]
    %v603 = vld [vmem:[#allocation7 + $0x5d0] sm:$0xff]
    %v604 = vld [vmem:[#allocation7 + $0x5d8] sm:$0xff]
    %v605 = vld [vmem:[#allocation7 + $0x5e0] sm:$0xff]
    %v606 = vld [vmem:[#allocation7 + $0x5e8] sm:$0xff]
    %v607 = vld [vmem:[#allocation7 + $0x5f0] sm:$0xff]
    %v608 = vld [vmem:[#allocation7 + $0x5f8] sm:$0xff]
    %v609 = vld [vmem:[#allocation7 + $0x600] sm:$0xff]
    %v610 = vld [vmem:[#allocation7 + $0x608] sm:$0xff]
    %v611 = vld [vmem:[#allocation7 + $0x610] sm:$0xff]
    %v612 = vld [vmem:[#allocation7 + $0x618] sm:$0xff]
    %v613 = vld [vmem:[#allocation7 + $0x620] sm:$0xff]
    %v614 = vld [vmem:[#allocation7 + $0x628] sm:$0xff]
    %v615 = vld [vmem:[#allocation7 + $0x630] sm:$0xff]
    %v616 = vld [vmem:[#allocation7 + $0x638] sm:$0xff]
    %v617 = vld [vmem:[#allocation7 + $0x640] sm:$0xff]
    %v618 = vld [vmem:[#allocation7 + $0x648] sm:$0xff]
    %v619 = vld [vmem:[#allocation7 + $0x650] sm:$0xff]
    %v620 = vld [vmem:[#allocation7 + $0x658] sm:$0xff]
    %v621 = vld [vmem:[#allocation7 + $0x660] sm:$0xff]
    %v622 = vld [vmem:[#allocation7 + $0x668] sm:$0xff]
    %v623 = vld [vmem:[#allocation7 + $0x670] sm:$0xff]
    %v624 = vld [vmem:[#allocation7 + $0x678] sm:$0xff]
    %v625 = vld [vmem:[#allocation7 + $0x680] sm:$0xff]
    %v626 = vld [vmem:[#allocation7 + $0x688] sm:$0xff]
    %v627 = vld [vmem:[#allocation7 + $0x690] sm:$0xff]
    %v628 = vld [vmem:[#allocation7 + $0x698] sm:$0xff]
    %v629 = vld [vmem:[#allocation7 + $0x6a0] sm:$0xff]
    %v630 = vld [vmem:[#allocation7 + $0x6a8] sm:$0xff]
    %v631 = vld [vmem:[#allocation7 + $0x6b0] sm:$0xff]
    %v632 = vld [vmem:[#allocation7 + $0x6b8] sm:$0xff]
    %v633 = vld [vmem:[#allocation7 + $0x6c0] sm:$0xff]
    %v634 = vld [vmem:[#allocation7 + $0x6c8] sm:$0xff]
    %v635 = vld [vmem:[#allocation7 + $0x6d0] sm:$0xff]
    %v636 = vld [vmem:[#allocation7 + $0x6d8] sm:$0xff]
    %v637 = vld [vmem:[#allocation7 + $0x6e0] sm:$0xff]
    %v638 = vld [vmem:[#allocation7 + $0x6e8] sm:$0xff]
    %v639 = vld [vmem:[#allocation7 + $0x6f0] sm:$0xff]
    %v640 = vld [vmem:[#allocation7 + $0x6f8] sm:$0xff]
    %v641 = vld [vmem:[#allocation7 + $0x700] sm:$0xff]
    %v642 = vld [vmem:[#allocation7 + $0x708] sm:$0xff]
    %v643 = vld [vmem:[#allocation7 + $0x710] sm:$0xff]
    %v644 = vld [vmem:[#allocation7 + $0x718] sm:$0xff]
    %v645 = vld [vmem:[#allocation7 + $0x720] sm:$0xff]
    %v646 = vld [vmem:[#allocation7 + $0x728] sm:$0xff]
    %v647 = vld [vmem:[#allocation7 + $0x730] sm:$0xff]
    %v648 = vld [vmem:[#allocation7 + $0x738] sm:$0xff]
    %v649 = vld [vmem:[#allocation7 + $0x740] sm:$0xff]
    %v650 = vld [vmem:[#allocation7 + $0x748] sm:$0xff]
    %v651 = vld [vmem:[#allocation7 + $0x750] sm:$0xff]
    %v652 = vld [vmem:[#allocation7 + $0x758] sm:$0xff]
    %v653 = vld [vmem:[#allocation7 + $0x760] sm:$0xff]
    %v654 = vld [vmem:[#allocation7 + $0x768] sm:$0xff]
    %v655 = vld [vmem:[#allocation7 + $0x770] sm:$0xff]
    %v656 = vld [vmem:[#allocation7 + $0x778] sm:$0xff]
    %v657 = vld [vmem:[#allocation7 + $0x780] sm:$0xff]
    %v658 = vld [vmem:[#allocation7 + $0x788] sm:$0xff]
    %v659 = vld [vmem:[#allocation7 + $0x790] sm:$0xff]
    %v660 = vld [vmem:[#allocation7 + $0x798] sm:$0xff]
    %v661 = vld [vmem:[#allocation7 + $0x7a0] sm:$0xff]
    %v662 = vld [vmem:[#allocation7 + $0x7a8] sm:$0xff]
    %v663 = vld [vmem:[#allocation7 + $0x7b0] sm:$0xff]
    %v664 = vld [vmem:[#allocation7 + $0x7b8] sm:$0xff]
    %v665 = vld [vmem:[#allocation7 + $0x7c0] sm:$0xff]
    %v666 = vld [vmem:[#allocation7 + $0x7c8] sm:$0xff]
    %v667 = vld [vmem:[#allocation7 + $0x7d0] sm:$0xff]
    %v668 = vld [vmem:[#allocation7 + $0x7d8] sm:$0xff]
    %v669 = vld [vmem:[#allocation7 + $0x7e0] sm:$0xff]
    %v670 = vld [vmem:[#allocation7 + $0x7e8] sm:$0xff]
    %v671 = vld [vmem:[#allocation7 + $0x7f0] sm:$0xff]
    %v672 = vld [vmem:[#allocation7 + $0x7f8] sm:$0xff]
    %v674 = vlaneseq
    %v675 = vshrl.u32 %v674, 7
    %v676 = vsub.s32 0, %v675
    %v677 = vrot.slane %v80, %v676
    %v678 = vlaneseq
    %v679 = vshrl.u32 %v678, 7
    %v680 = vsub.s32 1, %v679
    %v681 = vrot.slane %v80, %v680
    %v682 = vlaneseq
    %v683 = vshrl.u32 %v682, 7
    %v684 = vsub.s32 2, %v683
    %v685 = vrot.slane %v80, %v684
    %v686 = vlaneseq
    %v687 = vshrl.u32 %v686, 7
    %v688 = vsub.s32 3, %v687
    %v689 = vrot.slane %v80, %v688
    %v690 = vlaneseq
    %v691 = vshrl.u32 %v690, 7
    %v692 = vsub.s32 4, %v691
    %v693 = vrot.slane %v80, %v692
    %v694 = vlaneseq
    %v695 = vshrl.u32 %v694, 7
    %v696 = vsub.s32 5, %v695
    %v697 = vrot.slane %v80, %v696
    %v698 = vlaneseq
    %v699 = vshrl.u32 %v698, 7
    %v700 = vsub.s32 6, %v699
    %v701 = vrot.slane %v80, %v700
    %v702 = vlaneseq
    %v703 = vshrl.u32 %v702, 7
    %v704 = vsub.s32 7, %v703
    %v705 = vrot.slane %v80, %v704
    %v970 = vunpack.c.l.b16 %v417
    %v971 = vunpack.c.h.b16 %v417
    %v972 = vunpack.c.l.b16 %v418
    %v973 = vunpack.c.h.b16 %v418
    %v974 = vunpack.c.l.b16 %v419
    %v975 = vunpack.c.h.b16 %v419
    %v976 = vunpack.c.l.b16 %v420
    %v977 = vunpack.c.h.b16 %v420
    %v978 = vunpack.c.l.b16 %v421
    %v979 = vunpack.c.h.b16 %v421
    %v980 = vunpack.c.l.b16 %v422
    %v981 = vunpack.c.h.b16 %v422
    %v982 = vunpack.c.l.b16 %v423
    %v983 = vunpack.c.h.b16 %v423
    %v984 = vunpack.c.l.b16 %v424
    %v985 = vunpack.c.h.b16 %v424
    %v986 = vunpack.c.l.b16 %v425
    %v987 = vunpack.c.h.b16 %v425
    %v988 = vunpack.c.l.b16 %v426
    %v989 = vunpack.c.h.b16 %v426
    %v990 = vunpack.c.l.b16 %v427
    %v991 = vunpack.c.h.b16 %v427
    %v992 = vunpack.c.l.b16 %v428
    %v993 = vunpack.c.h.b16 %v428
    %v994 = vunpack.c.l.b16 %v429
    %v995 = vunpack.c.h.b16 %v429
    %v996 = vunpack.c.l.b16 %v430
    %v997 = vunpack.c.h.b16 %v430
    %v998 = vunpack.c.l.b16 %v431
    %v999 = vunpack.c.h.b16 %v431
    %v1000 = vunpack.c.l.b16 %v432
    %v1001 = vunpack.c.h.b16 %v432
    %v1002 = vunpack.c.l.b16 %v433
    %v1003 = vunpack.c.h.b16 %v433
    %v1004 = vunpack.c.l.b16 %v434
    %v1005 = vunpack.c.h.b16 %v434
    %v1006 = vunpack.c.l.b16 %v435
    %v1007 = vunpack.c.h.b16 %v435
    %v1008 = vunpack.c.l.b16 %v436
    %v1009 = vunpack.c.h.b16 %v436
    %v1010 = vunpack.c.l.b16 %v437
    %v1011 = vunpack.c.h.b16 %v437
    %v1012 = vunpack.c.l.b16 %v438
    %v1013 = vunpack.c.h.b16 %v438
    %v1014 = vunpack.c.l.b16 %v439
    %v1015 = vunpack.c.h.b16 %v439
    %v1016 = vunpack.c.l.b16 %v440
    %v1017 = vunpack.c.h.b16 %v440
    %v1018 = vunpack.c.l.b16 %v441
    %v1019 = vunpack.c.h.b16 %v441
    %v1020 = vunpack.c.l.b16 %v442
    %v1021 = vunpack.c.h.b16 %v442
    %v1022 = vunpack.c.l.b16 %v443
    %v1023 = vunpack.c.h.b16 %v443
    %v1024 = vunpack.c.l.b16 %v444
    %v1025 = vunpack.c.h.b16 %v444
    %v1026 = vunpack.c.l.b16 %v445
    %v1027 = vunpack.c.h.b16 %v445
    %v1028 = vunpack.c.l.b16 %v446
    %v1029 = vunpack.c.h.b16 %v446
    %v1030 = vunpack.c.l.b16 %v447
    %v1031 = vunpack.c.h.b16 %v447
    %v1032 = vunpack.c.l.b16 %v448
    %v1033 = vunpack.c.h.b16 %v448
    %v1034 = vunpack.c.l.b16 %v449
    %v1035 = vunpack.c.h.b16 %v449
    %v1036 = vunpack.c.l.b16 %v450
    %v1037 = vunpack.c.h.b16 %v450
    %v1038 = vunpack.c.l.b16 %v451
    %v1039 = vunpack.c.h.b16 %v451
    %v1040 = vunpack.c.l.b16 %v452
    %v1041 = vunpack.c.h.b16 %v452
    %v1042 = vunpack.c.l.b16 %v453
    %v1043 = vunpack.c.h.b16 %v453
    %v1044 = vunpack.c.l.b16 %v454
    %v1045 = vunpack.c.h.b16 %v454
    %v1046 = vunpack.c.l.b16 %v455
    %v1047 = vunpack.c.h.b16 %v455
    %v1048 = vunpack.c.l.b16 %v456
    %v1049 = vunpack.c.h.b16 %v456
    %v1050 = vunpack.c.l.b16 %v457
    %v1051 = vunpack.c.h.b16 %v457
    %v1052 = vunpack.c.l.b16 %v458
    %v1053 = vunpack.c.h.b16 %v458
    %v1054 = vunpack.c.l.b16 %v459
    %v1055 = vunpack.c.h.b16 %v459
    %v1056 = vunpack.c.l.b16 %v460
    %v1057 = vunpack.c.h.b16 %v460
    %v1058 = vunpack.c.l.b16 %v461
    %v1059 = vunpack.c.h.b16 %v461
    %v1060 = vunpack.c.l.b16 %v462
    %v1061 = vunpack.c.h.b16 %v462
    %v1062 = vunpack.c.l.b16 %v463
    %v1063 = vunpack.c.h.b16 %v463
    %v1064 = vunpack.c.l.b16 %v464
    %v1065 = vunpack.c.h.b16 %v464
    %v1066 = vunpack.c.l.b16 %v465
    %v1067 = vunpack.c.h.b16 %v465
    %v1068 = vunpack.c.l.b16 %v466
    %v1069 = vunpack.c.h.b16 %v466
    %v1070 = vunpack.c.l.b16 %v467
    %v1071 = vunpack.c.h.b16 %v467
    %v1072 = vunpack.c.l.b16 %v468
    %v1073 = vunpack.c.h.b16 %v468
    %v1074 = vunpack.c.l.b16 %v469
    %v1075 = vunpack.c.h.b16 %v469
    %v1076 = vunpack.c.l.b16 %v470
    %v1077 = vunpack.c.h.b16 %v470
    %v1078 = vunpack.c.l.b16 %v471
    %v1079 = vunpack.c.h.b16 %v471
    %v1080 = vunpack.c.l.b16 %v472
    %v1081 = vunpack.c.h.b16 %v472
    %v1082 = vunpack.c.l.b16 %v473
    %v1083 = vunpack.c.h.b16 %v473
    %v1084 = vunpack.c.l.b16 %v474
    %v1085 = vunpack.c.h.b16 %v474
    %v1086 = vunpack.c.l.b16 %v475
    %v1087 = vunpack.c.h.b16 %v475
    %v1088 = vunpack.c.l.b16 %v476
    %v1089 = vunpack.c.h.b16 %v476
    %v1090 = vunpack.c.l.b16 %v477
    %v1091 = vunpack.c.h.b16 %v477
    %v1092 = vunpack.c.l.b16 %v478
    %v1093 = vunpack.c.h.b16 %v478
    %v1094 = vunpack.c.l.b16 %v479
    %v1095 = vunpack.c.h.b16 %v479
    %v1096 = vunpack.c.l.b16 %v480
    %v1097 = vunpack.c.h.b16 %v480
    %v1098 = vunpack.c.l.b16 %v481
    %v1099 = vunpack.c.h.b16 %v481
    %v1100 = vunpack.c.l.b16 %v482
    %v1101 = vunpack.c.h.b16 %v482
    %v1102 = vunpack.c.l.b16 %v483
    %v1103 = vunpack.c.h.b16 %v483
    %v1104 = vunpack.c.l.b16 %v484
    %v1105 = vunpack.c.h.b16 %v484
    %v1106 = vunpack.c.l.b16 %v485
    %v1107 = vunpack.c.h.b16 %v485
    %v1108 = vunpack.c.l.b16 %v486
    %v1109 = vunpack.c.h.b16 %v486
    %v1110 = vunpack.c.l.b16 %v487
    %v1111 = vunpack.c.h.b16 %v487
    %v1112 = vunpack.c.l.b16 %v488
    %v1113 = vunpack.c.h.b16 %v488
    %v1114 = vunpack.c.l.b16 %v489
    %v1115 = vunpack.c.h.b16 %v489
    %v1116 = vunpack.c.l.b16 %v490
    %v1117 = vunpack.c.h.b16 %v490
    %v1118 = vunpack.c.l.b16 %v491
    %v1119 = vunpack.c.h.b16 %v491
    %v1120 = vunpack.c.l.b16 %v492
    %v1121 = vunpack.c.h.b16 %v492
    %v1122 = vunpack.c.l.b16 %v493
    %v1123 = vunpack.c.h.b16 %v493
    %v1124 = vunpack.c.l.b16 %v494
    %v1125 = vunpack.c.h.b16 %v494
    %v1126 = vunpack.c.l.b16 %v495
    %v1127 = vunpack.c.h.b16 %v495
    %v1128 = vunpack.c.l.b16 %v496
    %v1129 = vunpack.c.h.b16 %v496
    %v1130 = vunpack.c.l.b16 %v497
    %v1131 = vunpack.c.h.b16 %v497
    %v1132 = vunpack.c.l.b16 %v498
    %v1133 = vunpack.c.h.b16 %v498
    %v1134 = vunpack.c.l.b16 %v499
    %v1135 = vunpack.c.h.b16 %v499
    %v1136 = vunpack.c.l.b16 %v500
    %v1137 = vunpack.c.h.b16 %v500
    %v1138 = vunpack.c.l.b16 %v501
    %v1139 = vunpack.c.h.b16 %v501
    %v1140 = vunpack.c.l.b16 %v502
    %v1141 = vunpack.c.h.b16 %v502
    %v1142 = vunpack.c.l.b16 %v503
    %v1143 = vunpack.c.h.b16 %v503
    %v1144 = vunpack.c.l.b16 %v504
    %v1145 = vunpack.c.h.b16 %v504
    %v1146 = vunpack.c.l.b16 %v505
    %v1147 = vunpack.c.h.b16 %v505
    %v1148 = vunpack.c.l.b16 %v506
    %v1149 = vunpack.c.h.b16 %v506
    %v1150 = vunpack.c.l.b16 %v507
    %v1151 = vunpack.c.h.b16 %v507
    %v1152 = vunpack.c.l.b16 %v508
    %v1153 = vunpack.c.h.b16 %v508
    %v1154 = vunpack.c.l.b16 %v509
    %v1155 = vunpack.c.h.b16 %v509
    %v1156 = vunpack.c.l.b16 %v510
    %v1157 = vunpack.c.h.b16 %v510
    %v1158 = vunpack.c.l.b16 %v511
    %v1159 = vunpack.c.h.b16 %v511
    %v1160 = vunpack.c.l.b16 %v512
    %v1161 = vunpack.c.h.b16 %v512
    %v1162 = vunpack.c.l.b16 %v513
    %v1163 = vunpack.c.h.b16 %v513
    %v1164 = vunpack.c.l.b16 %v514
    %v1165 = vunpack.c.h.b16 %v514
    %v1166 = vunpack.c.l.b16 %v515
    %v1167 = vunpack.c.h.b16 %v515
    %v1168 = vunpack.c.l.b16 %v516
    %v1169 = vunpack.c.h.b16 %v516
    %v1170 = vunpack.c.l.b16 %v517
    %v1171 = vunpack.c.h.b16 %v517
    %v1172 = vunpack.c.l.b16 %v518
    %v1173 = vunpack.c.h.b16 %v518
    %v1174 = vunpack.c.l.b16 %v519
    %v1175 = vunpack.c.h.b16 %v519
    %v1176 = vunpack.c.l.b16 %v520
    %v1177 = vunpack.c.h.b16 %v520
    %v1178 = vunpack.c.l.b16 %v521
    %v1179 = vunpack.c.h.b16 %v521
    %v1180 = vunpack.c.l.b16 %v522
    %v1181 = vunpack.c.h.b16 %v522
    %v1182 = vunpack.c.l.b16 %v523
    %v1183 = vunpack.c.h.b16 %v523
    %v1184 = vunpack.c.l.b16 %v524
    %v1185 = vunpack.c.h.b16 %v524
    %v1186 = vunpack.c.l.b16 %v525
    %v1187 = vunpack.c.h.b16 %v525
    %v1188 = vunpack.c.l.b16 %v526
    %v1189 = vunpack.c.h.b16 %v526
    %v1190 = vunpack.c.l.b16 %v527
    %v1191 = vunpack.c.h.b16 %v527
    %v1192 = vunpack.c.l.b16 %v528
    %v1193 = vunpack.c.h.b16 %v528
    %v1194 = vunpack.c.l.b16 %v529
    %v1195 = vunpack.c.h.b16 %v529
    %v1196 = vunpack.c.l.b16 %v530
    %v1197 = vunpack.c.h.b16 %v530
    %v1198 = vunpack.c.l.b16 %v531
    %v1199 = vunpack.c.h.b16 %v531
    %v1200 = vunpack.c.l.b16 %v532
    %v1201 = vunpack.c.h.b16 %v532
    %v1202 = vunpack.c.l.b16 %v533
    %v1203 = vunpack.c.h.b16 %v533
    %v1204 = vunpack.c.l.b16 %v534
    %v1205 = vunpack.c.h.b16 %v534
    %v1206 = vunpack.c.l.b16 %v535
    %v1207 = vunpack.c.h.b16 %v535
    %v1208 = vunpack.c.l.b16 %v536
    %v1209 = vunpack.c.h.b16 %v536
    %v1210 = vunpack.c.l.b16 %v537
    %v1211 = vunpack.c.h.b16 %v537
    %v1212 = vunpack.c.l.b16 %v538
    %v1213 = vunpack.c.h.b16 %v538
    %v1214 = vunpack.c.l.b16 %v539
    %v1215 = vunpack.c.h.b16 %v539
    %v1216 = vunpack.c.l.b16 %v540
    %v1217 = vunpack.c.h.b16 %v540
    %v1218 = vunpack.c.l.b16 %v541
    %v1219 = vunpack.c.h.b16 %v541
    %v1220 = vunpack.c.l.b16 %v542
    %v1221 = vunpack.c.h.b16 %v542
    %v1222 = vunpack.c.l.b16 %v543
    %v1223 = vunpack.c.h.b16 %v543
    %v1224 = vunpack.c.l.b16 %v544
    %v1225 = vunpack.c.h.b16 %v544
    %v1226 = vunpack.c.l.b16 %v545
    %v1227 = vunpack.c.h.b16 %v545
    %v1228 = vunpack.c.l.b16 %v546
    %v1229 = vunpack.c.h.b16 %v546
    %v1230 = vunpack.c.l.b16 %v547
    %v1231 = vunpack.c.h.b16 %v547
    %v1232 = vunpack.c.l.b16 %v548
    %v1233 = vunpack.c.h.b16 %v548
    %v1234 = vunpack.c.l.b16 %v549
    %v1235 = vunpack.c.h.b16 %v549
    %v1236 = vunpack.c.l.b16 %v550
    %v1237 = vunpack.c.h.b16 %v550
    %v1238 = vunpack.c.l.b16 %v551
    %v1239 = vunpack.c.h.b16 %v551
    %v1240 = vunpack.c.l.b16 %v552
    %v1241 = vunpack.c.h.b16 %v552
    %v1242 = vunpack.c.l.b16 %v553
    %v1243 = vunpack.c.h.b16 %v553
    %v1244 = vunpack.c.l.b16 %v554
    %v1245 = vunpack.c.h.b16 %v554
    %v1246 = vunpack.c.l.b16 %v555
    %v1247 = vunpack.c.h.b16 %v555
    %v1248 = vunpack.c.l.b16 %v556
    %v1249 = vunpack.c.h.b16 %v556
    %v1250 = vunpack.c.l.b16 %v557
    %v1251 = vunpack.c.h.b16 %v557
    %v1252 = vunpack.c.l.b16 %v558
    %v1253 = vunpack.c.h.b16 %v558
    %v1254 = vunpack.c.l.b16 %v559
    %v1255 = vunpack.c.h.b16 %v559
    %v1256 = vunpack.c.l.b16 %v560
    %v1257 = vunpack.c.h.b16 %v560
    %v1258 = vunpack.c.l.b16 %v561
    %v1259 = vunpack.c.h.b16 %v561
    %v1260 = vunpack.c.l.b16 %v562
    %v1261 = vunpack.c.h.b16 %v562
    %v1262 = vunpack.c.l.b16 %v563
    %v1263 = vunpack.c.h.b16 %v563
    %v1264 = vunpack.c.l.b16 %v564
    %v1265 = vunpack.c.h.b16 %v564
    %v1266 = vunpack.c.l.b16 %v565
    %v1267 = vunpack.c.h.b16 %v565
    %v1268 = vunpack.c.l.b16 %v566
    %v1269 = vunpack.c.h.b16 %v566
    %v1270 = vunpack.c.l.b16 %v567
    %v1271 = vunpack.c.h.b16 %v567
    %v1272 = vunpack.c.l.b16 %v568
    %v1273 = vunpack.c.h.b16 %v568
    %v1274 = vunpack.c.l.b16 %v569
    %v1275 = vunpack.c.h.b16 %v569
    %v1276 = vunpack.c.l.b16 %v570
    %v1277 = vunpack.c.h.b16 %v570
    %v1278 = vunpack.c.l.b16 %v571
    %v1279 = vunpack.c.h.b16 %v571
    %v1280 = vunpack.c.l.b16 %v572
    %v1281 = vunpack.c.h.b16 %v572
    %v1282 = vunpack.c.l.b16 %v573
    %v1283 = vunpack.c.h.b16 %v573
    %v1284 = vunpack.c.l.b16 %v574
    %v1285 = vunpack.c.h.b16 %v574
    %v1286 = vunpack.c.l.b16 %v575
    %v1287 = vunpack.c.h.b16 %v575
    %v1288 = vunpack.c.l.b16 %v576
    %v1289 = vunpack.c.h.b16 %v576
    %v1290 = vunpack.c.l.b16 %v577
    %v1291 = vunpack.c.h.b16 %v577
    %v1292 = vunpack.c.l.b16 %v578
    %v1293 = vunpack.c.h.b16 %v578
    %v1294 = vunpack.c.l.b16 %v579
    %v1295 = vunpack.c.h.b16 %v579
    %v1296 = vunpack.c.l.b16 %v580
    %v1297 = vunpack.c.h.b16 %v580
    %v1298 = vunpack.c.l.b16 %v581
    %v1299 = vunpack.c.h.b16 %v581
    %v1300 = vunpack.c.l.b16 %v582
    %v1301 = vunpack.c.h.b16 %v582
    %v1302 = vunpack.c.l.b16 %v583
    %v1303 = vunpack.c.h.b16 %v583
    %v1304 = vunpack.c.l.b16 %v584
    %v1305 = vunpack.c.h.b16 %v584
    %v1306 = vunpack.c.l.b16 %v585
    %v1307 = vunpack.c.h.b16 %v585
    %v1308 = vunpack.c.l.b16 %v586
    %v1309 = vunpack.c.h.b16 %v586
    %v1310 = vunpack.c.l.b16 %v587
    %v1311 = vunpack.c.h.b16 %v587
    %v1312 = vunpack.c.l.b16 %v588
    %v1313 = vunpack.c.h.b16 %v588
    %v1314 = vunpack.c.l.b16 %v589
    %v1315 = vunpack.c.h.b16 %v589
    %v1316 = vunpack.c.l.b16 %v590
    %v1317 = vunpack.c.h.b16 %v590
    %v1318 = vunpack.c.l.b16 %v591
    %v1319 = vunpack.c.h.b16 %v591
    %v1320 = vunpack.c.l.b16 %v592
    %v1321 = vunpack.c.h.b16 %v592
    %v1322 = vunpack.c.l.b16 %v593
    %v1323 = vunpack.c.h.b16 %v593
    %v1324 = vunpack.c.l.b16 %v594
    %v1325 = vunpack.c.h.b16 %v594
    %v1326 = vunpack.c.l.b16 %v595
    %v1327 = vunpack.c.h.b16 %v595
    %v1328 = vunpack.c.l.b16 %v596
    %v1329 = vunpack.c.h.b16 %v596
    %v1330 = vunpack.c.l.b16 %v597
    %v1331 = vunpack.c.h.b16 %v597
    %v1332 = vunpack.c.l.b16 %v598
    %v1333 = vunpack.c.h.b16 %v598
    %v1334 = vunpack.c.l.b16 %v599
    %v1335 = vunpack.c.h.b16 %v599
    %v1336 = vunpack.c.l.b16 %v600
    %v1337 = vunpack.c.h.b16 %v600
    %v1338 = vunpack.c.l.b16 %v601
    %v1339 = vunpack.c.h.b16 %v601
    %v1340 = vunpack.c.l.b16 %v602
    %v1341 = vunpack.c.h.b16 %v602
    %v1342 = vunpack.c.l.b16 %v603
    %v1343 = vunpack.c.h.b16 %v603
    %v1344 = vunpack.c.l.b16 %v604
    %v1345 = vunpack.c.h.b16 %v604
    %v1346 = vunpack.c.l.b16 %v605
    %v1347 = vunpack.c.h.b16 %v605
    %v1348 = vunpack.c.l.b16 %v606
    %v1349 = vunpack.c.h.b16 %v606
    %v1350 = vunpack.c.l.b16 %v607
    %v1351 = vunpack.c.h.b16 %v607
    %v1352 = vunpack.c.l.b16 %v608
    %v1353 = vunpack.c.h.b16 %v608
    %v1354 = vunpack.c.l.b16 %v609
    %v1355 = vunpack.c.h.b16 %v609
    %v1356 = vunpack.c.l.b16 %v610
    %v1357 = vunpack.c.h.b16 %v610
    %v1358 = vunpack.c.l.b16 %v611
    %v1359 = vunpack.c.h.b16 %v611
    %v1360 = vunpack.c.l.b16 %v612
    %v1361 = vunpack.c.h.b16 %v612
    %v1362 = vunpack.c.l.b16 %v613
    %v1363 = vunpack.c.h.b16 %v613
    %v1364 = vunpack.c.l.b16 %v614
    %v1365 = vunpack.c.h.b16 %v614
    %v1366 = vunpack.c.l.b16 %v615
    %v1367 = vunpack.c.h.b16 %v615
    %v1368 = vunpack.c.l.b16 %v616
    %v1369 = vunpack.c.h.b16 %v616
    %v1370 = vunpack.c.l.b16 %v617
    %v1371 = vunpack.c.h.b16 %v617
    %v1372 = vunpack.c.l.b16 %v618
    %v1373 = vunpack.c.h.b16 %v618
    %v1374 = vunpack.c.l.b16 %v619
    %v1375 = vunpack.c.h.b16 %v619
    %v1376 = vunpack.c.l.b16 %v620
    %v1377 = vunpack.c.h.b16 %v620
    %v1378 = vunpack.c.l.b16 %v621
    %v1379 = vunpack.c.h.b16 %v621
    %v1380 = vunpack.c.l.b16 %v622
    %v1381 = vunpack.c.h.b16 %v622
    %v1382 = vunpack.c.l.b16 %v623
    %v1383 = vunpack.c.h.b16 %v623
    %v1384 = vunpack.c.l.b16 %v624
    %v1385 = vunpack.c.h.b16 %v624
    %v1386 = vunpack.c.l.b16 %v625
    %v1387 = vunpack.c.h.b16 %v625
    %v1388 = vunpack.c.l.b16 %v626
    %v1389 = vunpack.c.h.b16 %v626
    %v1390 = vunpack.c.l.b16 %v627
    %v1391 = vunpack.c.h.b16 %v627
    %v1392 = vunpack.c.l.b16 %v628
    %v1393 = vunpack.c.h.b16 %v628
    %v1394 = vunpack.c.l.b16 %v629
    %v1395 = vunpack.c.h.b16 %v629
    %v1396 = vunpack.c.l.b16 %v630
    %v1397 = vunpack.c.h.b16 %v630
    %v1398 = vunpack.c.l.b16 %v631
    %v1399 = vunpack.c.h.b16 %v631
    %v1400 = vunpack.c.l.b16 %v632
    %v1401 = vunpack.c.h.b16 %v632
    %v1402 = vunpack.c.l.b16 %v633
    %v1403 = vunpack.c.h.b16 %v633
    %v1404 = vunpack.c.l.b16 %v634
    %v1405 = vunpack.c.h.b16 %v634
    %v1406 = vunpack.c.l.b16 %v635
    %v1407 = vunpack.c.h.b16 %v635
    %v1408 = vunpack.c.l.b16 %v636
    %v1409 = vunpack.c.h.b16 %v636
    %v1410 = vunpack.c.l.b16 %v637
    %v1411 = vunpack.c.h.b16 %v637
    %v1412 = vunpack.c.l.b16 %v638
    %v1413 = vunpack.c.h.b16 %v638
    %v1414 = vunpack.c.l.b16 %v639
    %v1415 = vunpack.c.h.b16 %v639
    %v1416 = vunpack.c.l.b16 %v640
    %v1417 = vunpack.c.h.b16 %v640
    %v1418 = vunpack.c.l.b16 %v641
    %v1419 = vunpack.c.h.b16 %v641
    %v1420 = vunpack.c.l.b16 %v642
    %v1421 = vunpack.c.h.b16 %v642
    %v1422 = vunpack.c.l.b16 %v643
    %v1423 = vunpack.c.h.b16 %v643
    %v1424 = vunpack.c.l.b16 %v644
    %v1425 = vunpack.c.h.b16 %v644
    %v1426 = vunpack.c.l.b16 %v645
    %v1427 = vunpack.c.h.b16 %v645
    %v1428 = vunpack.c.l.b16 %v646
    %v1429 = vunpack.c.h.b16 %v646
    %v1430 = vunpack.c.l.b16 %v647
    %v1431 = vunpack.c.h.b16 %v647
    %v1432 = vunpack.c.l.b16 %v648
    %v1433 = vunpack.c.h.b16 %v648
    %v1434 = vunpack.c.l.b16 %v649
    %v1435 = vunpack.c.h.b16 %v649
    %v1436 = vunpack.c.l.b16 %v650
    %v1437 = vunpack.c.h.b16 %v650
    %v1438 = vunpack.c.l.b16 %v651
    %v1439 = vunpack.c.h.b16 %v651
    %v1440 = vunpack.c.l.b16 %v652
    %v1441 = vunpack.c.h.b16 %v652
    %v1442 = vunpack.c.l.b16 %v653
    %v1443 = vunpack.c.h.b16 %v653
    %v1444 = vunpack.c.l.b16 %v654
    %v1445 = vunpack.c.h.b16 %v654
    %v1446 = vunpack.c.l.b16 %v655
    %v1447 = vunpack.c.h.b16 %v655
    %v1448 = vunpack.c.l.b16 %v656
    %v1449 = vunpack.c.h.b16 %v656
    %v1450 = vunpack.c.l.b16 %v657
    %v1451 = vunpack.c.h.b16 %v657
    %v1452 = vunpack.c.l.b16 %v658
    %v1453 = vunpack.c.h.b16 %v658
    %v1454 = vunpack.c.l.b16 %v659
    %v1455 = vunpack.c.h.b16 %v659
    %v1456 = vunpack.c.l.b16 %v660
    %v1457 = vunpack.c.h.b16 %v660
    %v1458 = vunpack.c.l.b16 %v661
    %v1459 = vunpack.c.h.b16 %v661
    %v1460 = vunpack.c.l.b16 %v662
    %v1461 = vunpack.c.h.b16 %v662
    %v1462 = vunpack.c.l.b16 %v663
    %v1463 = vunpack.c.h.b16 %v663
    %v1464 = vunpack.c.l.b16 %v664
    %v1465 = vunpack.c.h.b16 %v664
    %v1466 = vunpack.c.l.b16 %v665
    %v1467 = vunpack.c.h.b16 %v665
    %v1468 = vunpack.c.l.b16 %v666
    %v1469 = vunpack.c.h.b16 %v666
    %v1470 = vunpack.c.l.b16 %v667
    %v1471 = vunpack.c.h.b16 %v667
    %v1472 = vunpack.c.l.b16 %v668
    %v1473 = vunpack.c.h.b16 %v668
    %v1474 = vunpack.c.l.b16 %v669
    %v1475 = vunpack.c.h.b16 %v669
    %v1476 = vunpack.c.l.b16 %v670
    %v1477 = vunpack.c.h.b16 %v670
    %v1478 = vunpack.c.l.b16 %v671
    %v1479 = vunpack.c.h.b16 %v671
    %v1480 = vunpack.c.l.b16 %v672
    %v1481 = vunpack.c.h.b16 %v672
    %v1482 = vpack.c.b16 %v978, %v970
    %v1483 = vpack.c.b16 %v979, %v971
    %v1484 = vpack.c.b16 %v980, %v972
    %v1485 = vpack.c.b16 %v981, %v973
    %v1486 = vpack.c.b16 %v982, %v974
    %v1487 = vpack.c.b16 %v983, %v975
    %v1488 = vpack.c.b16 %v984, %v976
    %v1489 = vpack.c.b16 %v985, %v977
    %v1490 = vpack.c.b16 %v994, %v986
    %v1491 = vpack.c.b16 %v995, %v987
    %v1492 = vpack.c.b16 %v996, %v988
    %v1493 = vpack.c.b16 %v997, %v989
    %v1494 = vpack.c.b16 %v998, %v990
    %v1495 = vpack.c.b16 %v999, %v991
    %v1496 = vpack.c.b16 %v1000, %v992
    %v1497 = vpack.c.b16 %v1001, %v993
    %v1498 = vpack.c.b16 %v1010, %v1002
    %v1499 = vpack.c.b16 %v1011, %v1003
    %v1500 = vpack.c.b16 %v1012, %v1004
    %v1501 = vpack.c.b16 %v1013, %v1005
    %v1502 = vpack.c.b16 %v1014, %v1006
    %v1503 = vpack.c.b16 %v1015, %v1007
    %v1504 = vpack.c.b16 %v1016, %v1008
    %v1505 = vpack.c.b16 %v1017, %v1009
    %v1506 = vpack.c.b16 %v1026, %v1018
    %v1507 = vpack.c.b16 %v1027, %v1019
    %v1508 = vpack.c.b16 %v1028, %v1020
    %v1509 = vpack.c.b16 %v1029, %v1021
    %v1510 = vpack.c.b16 %v1030, %v1022
    %v1511 = vpack.c.b16 %v1031, %v1023
    %v1512 = vpack.c.b16 %v1032, %v1024
    %v1513 = vpack.c.b16 %v1033, %v1025
    %v1514 = vpack.c.b16 %v1042, %v1034
    %v1515 = vpack.c.b16 %v1043, %v1035
    %v1516 = vpack.c.b16 %v1044, %v1036
    %v1517 = vpack.c.b16 %v1045, %v1037
    %v1518 = vpack.c.b16 %v1046, %v1038
    %v1519 = vpack.c.b16 %v1047, %v1039
    %v1520 = vpack.c.b16 %v1048, %v1040
    %v1521 = vpack.c.b16 %v1049, %v1041
    %v1522 = vpack.c.b16 %v1058, %v1050
    %v1523 = vpack.c.b16 %v1059, %v1051
    %v1524 = vpack.c.b16 %v1060, %v1052
    %v1525 = vpack.c.b16 %v1061, %v1053
    %v1526 = vpack.c.b16 %v1062, %v1054
    %v1527 = vpack.c.b16 %v1063, %v1055
    %v1528 = vpack.c.b16 %v1064, %v1056
    %v1529 = vpack.c.b16 %v1065, %v1057
    %v1530 = vpack.c.b16 %v1074, %v1066
    %v1531 = vpack.c.b16 %v1075, %v1067
    %v1532 = vpack.c.b16 %v1076, %v1068
    %v1533 = vpack.c.b16 %v1077, %v1069
    %v1534 = vpack.c.b16 %v1078, %v1070
    %v1535 = vpack.c.b16 %v1079, %v1071
    %v1536 = vpack.c.b16 %v1080, %v1072
    %v1537 = vpack.c.b16 %v1081, %v1073
    %v1538 = vpack.c.b16 %v1090, %v1082
    %v1539 = vpack.c.b16 %v1091, %v1083
    %v1540 = vpack.c.b16 %v1092, %v1084
    %v1541 = vpack.c.b16 %v1093, %v1085
    %v1542 = vpack.c.b16 %v1094, %v1086
    %v1543 = vpack.c.b16 %v1095, %v1087
    %v1544 = vpack.c.b16 %v1096, %v1088
    %v1545 = vpack.c.b16 %v1097, %v1089
    %v1546 = vpack.c.b16 %v1106, %v1098
    %v1547 = vpack.c.b16 %v1107, %v1099
    %v1548 = vpack.c.b16 %v1108, %v1100
    %v1549 = vpack.c.b16 %v1109, %v1101
    %v1550 = vpack.c.b16 %v1110, %v1102
    %v1551 = vpack.c.b16 %v1111, %v1103
    %v1552 = vpack.c.b16 %v1112, %v1104
    %v1553 = vpack.c.b16 %v1113, %v1105
    %v1554 = vpack.c.b16 %v1122, %v1114
    %v1555 = vpack.c.b16 %v1123, %v1115
    %v1556 = vpack.c.b16 %v1124, %v1116
    %v1557 = vpack.c.b16 %v1125, %v1117
    %v1558 = vpack.c.b16 %v1126, %v1118
    %v1559 = vpack.c.b16 %v1127, %v1119
    %v1560 = vpack.c.b16 %v1128, %v1120
    %v1561 = vpack.c.b16 %v1129, %v1121
    %v1562 = vpack.c.b16 %v1138, %v1130
    %v1563 = vpack.c.b16 %v1139, %v1131
    %v1564 = vpack.c.b16 %v1140, %v1132
    %v1565 = vpack.c.b16 %v1141, %v1133
    %v1566 = vpack.c.b16 %v1142, %v1134
    %v1567 = vpack.c.b16 %v1143, %v1135
    %v1568 = vpack.c.b16 %v1144, %v1136
    %v1569 = vpack.c.b16 %v1145, %v1137
    %v1570 = vpack.c.b16 %v1154, %v1146
    %v1571 = vpack.c.b16 %v1155, %v1147
    %v1572 = vpack.c.b16 %v1156, %v1148
    %v1573 = vpack.c.b16 %v1157, %v1149
    %v1574 = vpack.c.b16 %v1158, %v1150
    %v1575 = vpack.c.b16 %v1159, %v1151
    %v1576 = vpack.c.b16 %v1160, %v1152
    %v1577 = vpack.c.b16 %v1161, %v1153
    %v1578 = vpack.c.b16 %v1170, %v1162
    %v1579 = vpack.c.b16 %v1171, %v1163
    %v1580 = vpack.c.b16 %v1172, %v1164
    %v1581 = vpack.c.b16 %v1173, %v1165
    %v1582 = vpack.c.b16 %v1174, %v1166
    %v1583 = vpack.c.b16 %v1175, %v1167
    %v1584 = vpack.c.b16 %v1176, %v1168
    %v1585 = vpack.c.b16 %v1177, %v1169
    %v1586 = vpack.c.b16 %v1186, %v1178
    %v1587 = vpack.c.b16 %v1187, %v1179
    %v1588 = vpack.c.b16 %v1188, %v1180
    %v1589 = vpack.c.b16 %v1189, %v1181
    %v1590 = vpack.c.b16 %v1190, %v1182
    %v1591 = vpack.c.b16 %v1191, %v1183
    %v1592 = vpack.c.b16 %v1192, %v1184
    %v1593 = vpack.c.b16 %v1193, %v1185
    %v1594 = vpack.c.b16 %v1202, %v1194
    %v1595 = vpack.c.b16 %v1203, %v1195
    %v1596 = vpack.c.b16 %v1204, %v1196
    %v1597 = vpack.c.b16 %v1205, %v1197
    %v1598 = vpack.c.b16 %v1206, %v1198
    %v1599 = vpack.c.b16 %v1207, %v1199
    %v1600 = vpack.c.b16 %v1208, %v1200
    %v1601 = vpack.c.b16 %v1209, %v1201
    %v1602 = vpack.c.b16 %v1218, %v1210
    %v1603 = vpack.c.b16 %v1219, %v1211
    %v1604 = vpack.c.b16 %v1220, %v1212
    %v1605 = vpack.c.b16 %v1221, %v1213
    %v1606 = vpack.c.b16 %v1222, %v1214
    %v1607 = vpack.c.b16 %v1223, %v1215
    %v1608 = vpack.c.b16 %v1224, %v1216
    %v1609 = vpack.c.b16 %v1225, %v1217
    %v1610 = vpack.c.b16 %v1234, %v1226
    %v1611 = vpack.c.b16 %v1235, %v1227
    %v1612 = vpack.c.b16 %v1236, %v1228
    %v1613 = vpack.c.b16 %v1237, %v1229
    %v1614 = vpack.c.b16 %v1238, %v1230
    %v1615 = vpack.c.b16 %v1239, %v1231
    %v1616 = vpack.c.b16 %v1240, %v1232
    %v1617 = vpack.c.b16 %v1241, %v1233
    %v1618 = vpack.c.b16 %v1250, %v1242
    %v1619 = vpack.c.b16 %v1251, %v1243
    %v1620 = vpack.c.b16 %v1252, %v1244
    %v1621 = vpack.c.b16 %v1253, %v1245
    %v1622 = vpack.c.b16 %v1254, %v1246
    %v1623 = vpack.c.b16 %v1255, %v1247
    %v1624 = vpack.c.b16 %v1256, %v1248
    %v1625 = vpack.c.b16 %v1257, %v1249
    %v1626 = vpack.c.b16 %v1266, %v1258
    %v1627 = vpack.c.b16 %v1267, %v1259
    %v1628 = vpack.c.b16 %v1268, %v1260
    %v1629 = vpack.c.b16 %v1269, %v1261
    %v1630 = vpack.c.b16 %v1270, %v1262
    %v1631 = vpack.c.b16 %v1271, %v1263
    %v1632 = vpack.c.b16 %v1272, %v1264
    %v1633 = vpack.c.b16 %v1273, %v1265
    %v1634 = vpack.c.b16 %v1282, %v1274
    %v1635 = vpack.c.b16 %v1283, %v1275
    %v1636 = vpack.c.b16 %v1284, %v1276
    %v1637 = vpack.c.b16 %v1285, %v1277
    %v1638 = vpack.c.b16 %v1286, %v1278
    %v1639 = vpack.c.b16 %v1287, %v1279
    %v1640 = vpack.c.b16 %v1288, %v1280
    %v1641 = vpack.c.b16 %v1289, %v1281
    %v1642 = vpack.c.b16 %v1298, %v1290
    %v1643 = vpack.c.b16 %v1299, %v1291
    %v1644 = vpack.c.b16 %v1300, %v1292
    %v1645 = vpack.c.b16 %v1301, %v1293
    %v1646 = vpack.c.b16 %v1302, %v1294
    %v1647 = vpack.c.b16 %v1303, %v1295
    %v1648 = vpack.c.b16 %v1304, %v1296
    %v1649 = vpack.c.b16 %v1305, %v1297
    %v1650 = vpack.c.b16 %v1314, %v1306
    %v1651 = vpack.c.b16 %v1315, %v1307
    %v1652 = vpack.c.b16 %v1316, %v1308
    %v1653 = vpack.c.b16 %v1317, %v1309
    %v1654 = vpack.c.b16 %v1318, %v1310
    %v1655 = vpack.c.b16 %v1319, %v1311
    %v1656 = vpack.c.b16 %v1320, %v1312
    %v1657 = vpack.c.b16 %v1321, %v1313
    %v1658 = vpack.c.b16 %v1330, %v1322
    %v1659 = vpack.c.b16 %v1331, %v1323
    %v1660 = vpack.c.b16 %v1332, %v1324
    %v1661 = vpack.c.b16 %v1333, %v1325
    %v1662 = vpack.c.b16 %v1334, %v1326
    %v1663 = vpack.c.b16 %v1335, %v1327
    %v1664 = vpack.c.b16 %v1336, %v1328
    %v1665 = vpack.c.b16 %v1337, %v1329
    %v1666 = vpack.c.b16 %v1346, %v1338
    %v1667 = vpack.c.b16 %v1347, %v1339
    %v1668 = vpack.c.b16 %v1348, %v1340
    %v1669 = vpack.c.b16 %v1349, %v1341
    %v1670 = vpack.c.b16 %v1350, %v1342
    %v1671 = vpack.c.b16 %v1351, %v1343
    %v1672 = vpack.c.b16 %v1352, %v1344
    %v1673 = vpack.c.b16 %v1353, %v1345
    %v1674 = vpack.c.b16 %v1362, %v1354
    %v1675 = vpack.c.b16 %v1363, %v1355
    %v1676 = vpack.c.b16 %v1364, %v1356
    %v1677 = vpack.c.b16 %v1365, %v1357
    %v1678 = vpack.c.b16 %v1366, %v1358
    %v1679 = vpack.c.b16 %v1367, %v1359
    %v1680 = vpack.c.b16 %v1368, %v1360
    %v1681 = vpack.c.b16 %v1369, %v1361
    %v1682 = vpack.c.b16 %v1378, %v1370
    %v1683 = vpack.c.b16 %v1379, %v1371
    %v1684 = vpack.c.b16 %v1380, %v1372
    %v1685 = vpack.c.b16 %v1381, %v1373
    %v1686 = vpack.c.b16 %v1382, %v1374
    %v1687 = vpack.c.b16 %v1383, %v1375
    %v1688 = vpack.c.b16 %v1384, %v1376
    %v1689 = vpack.c.b16 %v1385, %v1377
    %v1690 = vpack.c.b16 %v1394, %v1386
    %v1691 = vpack.c.b16 %v1395, %v1387
    %v1692 = vpack.c.b16 %v1396, %v1388
    %v1693 = vpack.c.b16 %v1397, %v1389
    %v1694 = vpack.c.b16 %v1398, %v1390
    %v1695 = vpack.c.b16 %v1399, %v1391
    %v1696 = vpack.c.b16 %v1400, %v1392
    %v1697 = vpack.c.b16 %v1401, %v1393
    %v1698 = vpack.c.b16 %v1410, %v1402
    %v1699 = vpack.c.b16 %v1411, %v1403
    %v1700 = vpack.c.b16 %v1412, %v1404
    %v1701 = vpack.c.b16 %v1413, %v1405
    %v1702 = vpack.c.b16 %v1414, %v1406
    %v1703 = vpack.c.b16 %v1415, %v1407
    %v1704 = vpack.c.b16 %v1416, %v1408
    %v1705 = vpack.c.b16 %v1417, %v1409
    %v1706 = vpack.c.b16 %v1426, %v1418
    %v1707 = vpack.c.b16 %v1427, %v1419
    %v1708 = vpack.c.b16 %v1428, %v1420
    %v1709 = vpack.c.b16 %v1429, %v1421
    %v1710 = vpack.c.b16 %v1430, %v1422
    %v1711 = vpack.c.b16 %v1431, %v1423
    %v1712 = vpack.c.b16 %v1432, %v1424
    %v1713 = vpack.c.b16 %v1433, %v1425
    %v1714 = vpack.c.b16 %v1442, %v1434
    %v1715 = vpack.c.b16 %v1443, %v1435
    %v1716 = vpack.c.b16 %v1444, %v1436
    %v1717 = vpack.c.b16 %v1445, %v1437
    %v1718 = vpack.c.b16 %v1446, %v1438
    %v1719 = vpack.c.b16 %v1447, %v1439
    %v1720 = vpack.c.b16 %v1448, %v1440
    %v1721 = vpack.c.b16 %v1449, %v1441
    %v1722 = vpack.c.b16 %v1458, %v1450
    %v1723 = vpack.c.b16 %v1459, %v1451
    %v1724 = vpack.c.b16 %v1460, %v1452
    %v1725 = vpack.c.b16 %v1461, %v1453
    %v1726 = vpack.c.b16 %v1462, %v1454
    %v1727 = vpack.c.b16 %v1463, %v1455
    %v1728 = vpack.c.b16 %v1464, %v1456
    %v1729 = vpack.c.b16 %v1465, %v1457
    %v1730 = vpack.c.b16 %v1474, %v1466
    %v1731 = vpack.c.b16 %v1475, %v1467
    %v1732 = vpack.c.b16 %v1476, %v1468
    %v1733 = vpack.c.b16 %v1477, %v1469
    %v1734 = vpack.c.b16 %v1478, %v1470
    %v1735 = vpack.c.b16 %v1479, %v1471
    %v1736 = vpack.c.b16 %v1480, %v1472
    %v1737 = vpack.c.b16 %v1481, %v1473
    %1994 = vmatprep.subr.bf16.mxu0 %v1483
    %1995 = vmatpush1.bf16.msra.mxu0 %v1482
    %1996 = vmatprep.subr.bf16.mxu0 %v1491
    %1997 = vmatpush1.bf16.msra.mxu0 %v1490
    %1998 = vmatprep.subr.bf16.mxu0 %v1499
    %1999 = vmatpush1.bf16.msra.mxu0 %v1498
    %2000 = vmatprep.subr.bf16.mxu0 %v1507
    %2001 = vmatpush1.bf16.msra.mxu0 %v1506
    %2002 = vmatprep.subr.bf16.mxu0 %v1515
    %2003 = vmatpush1.bf16.msra.mxu0 %v1514
    %2004 = vmatprep.subr.bf16.mxu0 %v1523
    %2005 = vmatpush1.bf16.msra.mxu0 %v1522
    %2006 = vmatprep.subr.bf16.mxu0 %v1531
    %2007 = vmatpush1.bf16.msra.mxu0 %v1530
    %2008 = vmatprep.subr.bf16.mxu0 %v1539
    %2009 = vmatpush1.bf16.msra.mxu0 %v1538
    %2010 = vmatprep.subr.bf16.mxu0 %v1547
    %2011 = vmatpush1.bf16.msra.mxu0 %v1546
    %2012 = vmatprep.subr.bf16.mxu0 %v1555
    %2013 = vmatpush1.bf16.msra.mxu0 %v1554
    %2014 = vmatprep.subr.bf16.mxu0 %v1563
    %2015 = vmatpush1.bf16.msra.mxu0 %v1562
    %2016 = vmatprep.subr.bf16.mxu0 %v1571
    %2017 = vmatpush1.bf16.msra.mxu0 %v1570
    %2018 = vmatprep.subr.bf16.mxu0 %v1579
    %2019 = vmatpush1.bf16.msra.mxu0 %v1578
    %2020 = vmatprep.subr.bf16.mxu0 %v1587
    %2021 = vmatpush1.bf16.msra.mxu0 %v1586
    %2022 = vmatprep.subr.bf16.mxu0 %v1595
    %2023 = vmatpush1.bf16.msra.mxu0 %v1594
    %2024 = vmatprep.subr.bf16.mxu0 %v1603
    %2025 = vmatpush1.bf16.msra.mxu0 %v1602
    %2026 = vmatprep.mubr.bf16.mxu0 %v414
    %2027 = vmatmul.mubr.bf16.gmra.mrb[0].mxu0 %v413
    %v2028 = vpop.f32.mrb[0].mxu0
    %v2029 = vadd.f32 %v677, %v2028
    %v2030 = vpop.f32.mrb[0].mxu0
    %v2031 = vadd.f32 %v681, %v2030
    %v2032 = vpop.f32.mrb[0].mxu0
    %v2033 = vpop.f32.mrb[0].mxu0
    %2034 = vdwg.mxu0
    %2035 = vmatprep.subr.bf16.mxu0 %v1611
    %2036 = vmatpush1.bf16.msra.mxu0 %v1610
    %2037 = vmatprep.subr.bf16.mxu0 %v1619
    %2038 = vmatpush1.bf16.msra.mxu0 %v1618
    %2039 = vmatprep.subr.bf16.mxu0 %v1627
    %2040 = vmatpush1.bf16.msra.mxu0 %v1626
    %2041 = vmatprep.subr.bf16.mxu0 %v1635
    %2042 = vmatpush1.bf16.msra.mxu0 %v1634
    %2043 = vmatprep.subr.bf16.mxu0 %v1643
    %2044 = vmatpush1.bf16.msra.mxu0 %v1642
    %2045 = vmatprep.subr.bf16.mxu0 %v1651
    %2046 = vmatpush1.bf16.msra.mxu0 %v1650
    %2047 = vmatprep.subr.bf16.mxu0 %v1659
    %2048 = vmatpush1.bf16.msra.mxu0 %v1658
    %2049 = vmatprep.subr.bf16.mxu0 %v1667
    %2050 = vmatpush1.bf16.msra.mxu0 %v1666
    %2051 = vmatprep.subr.bf16.mxu0 %v1675
    %2052 = vmatpush1.bf16.msra.mxu0 %v1674
    %2053 = vmatprep.subr.bf16.mxu0 %v1683
    %2054 = vmatpush1.bf16.msra.mxu0 %v1682
    %2055 = vmatprep.subr.bf16.mxu0 %v1691
    %2056 = vmatpush1.bf16.msra.mxu0 %v1690
    %2057 = vmatprep.subr.bf16.mxu0 %v1699
    %2058 = vmatpush1.bf16.msra.mxu0 %v1698
    %2059 = vmatprep.subr.bf16.mxu0 %v1707
    %2060 = vmatpush1.bf16.msra.mxu0 %v1706
    %2061 = vmatprep.subr.bf16.mxu0 %v1715
    %2062 = vmatpush1.bf16.msra.mxu0 %v1714
    %2063 = vmatprep.subr.bf16.mxu0 %v1723
    %2064 = vmatpush1.bf16.msra.mxu0 %v1722
    %2065 = vmatprep.subr.bf16.mxu0 %v1731
    %2066 = vmatpush1.bf16.msra.mxu0 %v1730
    %2067 = vmatprep.mubr.bf16.mxu0 %v416
    %2068 = vmatmul.mubr.bf16.gmra.mrb[0].mxu0 %v415
    %v2069 = vpop.f32.mrb[0].mxu0
    %v2070 = vadd.f32 %v2029, %v2069
    %v2071 = vpop.f32.mrb[0].mxu0
    %v2072 = vadd.f32 %v2031, %v2071
    %v2073 = vpop.f32.mrb[0].mxu0
    %v2074 = vpop.f32.mrb[0].mxu0
    %2075 = vdwg.mxu0
    %2076 = vmatprep.subr.bf16.mxu0 %v1485
    %2077 = vmatpush1.bf16.msra.mxu0 %v1484
    %2078 = vmatprep.subr.bf16.mxu0 %v1493
    %2079 = vmatpush1.bf16.msra.mxu0 %v1492
    %2080 = vmatprep.subr.bf16.mxu0 %v1501
    %2081 = vmatpush1.bf16.msra.mxu0 %v1500
    %2082 = vmatprep.subr.bf16.mxu0 %v1509
    %2083 = vmatpush1.bf16.msra.mxu0 %v1508
    %2084 = vmatprep.subr.bf16.mxu0 %v1517
    %2085 = vmatpush1.bf16.msra.mxu0 %v1516
    %2086 = vmatprep.subr.bf16.mxu0 %v1525
    %2087 = vmatpush1.bf16.msra.mxu0 %v1524
    %2088 = vmatprep.subr.bf16.mxu0 %v1533
    %2089 = vmatpush1.bf16.msra.mxu0 %v1532
    %2090 = vmatprep.subr.bf16.mxu0 %v1541
    %2091 = vmatpush1.bf16.msra.mxu0 %v1540
    %2092 = vmatprep.subr.bf16.mxu0 %v1549
    %2093 = vmatpush1.bf16.msra.mxu0 %v1548
    %2094 = vmatprep.subr.bf16.mxu0 %v1557
    %2095 = vmatpush1.bf16.msra.mxu0 %v1556
    %2096 = vmatprep.subr.bf16.mxu0 %v1565
    %2097 = vmatpush1.bf16.msra.mxu0 %v1564
    %2098 = vmatprep.subr.bf16.mxu0 %v1573
    %2099 = vmatpush1.bf16.msra.mxu0 %v1572
    %2100 = vmatprep.subr.bf16.mxu0 %v1581
    %2101 = vmatpush1.bf16.msra.mxu0 %v1580
    %2102 = vmatprep.subr.bf16.mxu0 %v1589
    %2103 = vmatpush1.bf16.msra.mxu0 %v1588
    %2104 = vmatprep.subr.bf16.mxu0 %v1597
    %2105 = vmatpush1.bf16.msra.mxu0 %v1596
    %2106 = vmatprep.subr.bf16.mxu0 %v1605
    %2107 = vmatpush1.bf16.msra.mxu0 %v1604
    %2108 = vmatprep.mubr.bf16.mxu0 %v414
    %2109 = vmatmul.mubr.bf16.gmra.mrb[0].mxu0 %v413
    %v2110 = vpop.f32.mrb[0].mxu0
    %v2111 = vadd.f32 %v685, %v2110
    %v2112 = vpop.f32.mrb[0].mxu0
    %v2113 = vadd.f32 %v689, %v2112
    %v2114 = vpop.f32.mrb[0].mxu0
    %v2115 = vpop.f32.mrb[0].mxu0
    %2116 = vdwg.mxu0
    %2117 = vmatprep.subr.bf16.mxu0 %v1613
    %2118 = vmatpush1.bf16.msra.mxu0 %v1612
    %2119 = vmatprep.subr.bf16.mxu0 %v1621
    %2120 = vmatpush1.bf16.msra.mxu0 %v1620
    %2121 = vmatprep.subr.bf16.mxu0 %v1629
    %2122 = vmatpush1.bf16.msra.mxu0 %v1628
    %2123 = vmatprep.subr.bf16.mxu0 %v1637
    %2124 = vmatpush1.bf16.msra.mxu0 %v1636
    %2125 = vmatprep.subr.bf16.mxu0 %v1645
    %2126 = vmatpush1.bf16.msra.mxu0 %v1644
    %2127 = vmatprep.subr.bf16.mxu0 %v1653
    %2128 = vmatpush1.bf16.msra.mxu0 %v1652
    %2129 = vmatprep.subr.bf16.mxu0 %v1661
    %2130 = vmatpush1.bf16.msra.mxu0 %v1660
    %2131 = vmatprep.subr.bf16.mxu0 %v1669
    %2132 = vmatpush1.bf16.msra.mxu0 %v1668
    %2133 = vmatprep.subr.bf16.mxu0 %v1677
    %2134 = vmatpush1.bf16.msra.mxu0 %v1676
    %2135 = vmatprep.subr.bf16.mxu0 %v1685
    %2136 = vmatpush1.bf16.msra.mxu0 %v1684
    %2137 = vmatprep.subr.bf16.mxu0 %v1693
    %2138 = vmatpush1.bf16.msra.mxu0 %v1692
    %2139 = vmatprep.subr.bf16.mxu0 %v1701
    %2140 = vmatpush1.bf16.msra.mxu0 %v1700
    %2141 = vmatprep.subr.bf16.mxu0 %v1709
    %2142 = vmatpush1.bf16.msra.mxu0 %v1708
    %2143 = vmatprep.subr.bf16.mxu0 %v1717
    %2144 = vmatpush1.bf16.msra.mxu0 %v1716
    %2145 = vmatprep.subr.bf16.mxu0 %v1725
    %2146 = vmatpush1.bf16.msra.mxu0 %v1724
    %2147 = vmatprep.subr.bf16.mxu0 %v1733
    %2148 = vmatpush1.bf16.msra.mxu0 %v1732
    %2149 = vmatprep.mubr.bf16.mxu0 %v416
    %2150 = vmatmul.mubr.bf16.gmra.mrb[0].mxu0 %v415
    %v2151 = vpop.f32.mrb[0].mxu0
    %v2152 = vadd.f32 %v2111, %v2151
    %v2153 = vpop.f32.mrb[0].mxu0
    %v2154 = vadd.f32 %v2113, %v2153
    %v2155 = vpop.f32.mrb[0].mxu0
    %v2156 = vpop.f32.mrb[0].mxu0
    %2157 = vdwg.mxu0
    %2158 = vmatprep.subr.bf16.mxu0 %v1487
    %2159 = vmatpush1.bf16.msra.mxu0 %v1486
    %2160 = vmatprep.subr.bf16.mxu0 %v1495
    %2161 = vmatpush1.bf16.msra.mxu0 %v1494
    %2162 = vmatprep.subr.bf16.mxu0 %v1503
    %2163 = vmatpush1.bf16.msra.mxu0 %v1502
    %2164 = vmatprep.subr.bf16.mxu0 %v1511
    %2165 = vmatpush1.bf16.msra.mxu0 %v1510
    %2166 = vmatprep.subr.bf16.mxu0 %v1519
    %2167 = vmatpush1.bf16.msra.mxu0 %v1518
    %2168 = vmatprep.subr.bf16.mxu0 %v1527
    %2169 = vmatpush1.bf16.msra.mxu0 %v1526
    %2170 = vmatprep.subr.bf16.mxu0 %v1535
    %2171 = vmatpush1.bf16.msra.mxu0 %v1534
    %2172 = vmatprep.subr.bf16.mxu0 %v1543
    %2173 = vmatpush1.bf16.msra.mxu0 %v1542
    %2174 = vmatprep.subr.bf16.mxu0 %v1551
    %2175 = vmatpush1.bf16.msra.mxu0 %v1550
    %2176 = vmatprep.subr.bf16.mxu0 %v1559
    %2177 = vmatpush1.bf16.msra.mxu0 %v1558
    %2178 = vmatprep.subr.bf16.mxu0 %v1567
    %2179 = vmatpush1.bf16.msra.mxu0 %v1566
    %2180 = vmatprep.subr.bf16.mxu0 %v1575
    %2181 = vmatpush1.bf16.msra.mxu0 %v1574
    %2182 = vmatprep.subr.bf16.mxu0 %v1583
    %2183 = vmatpush1.bf16.msra.mxu0 %v1582
    %2184 = vmatprep.subr.bf16.mxu0 %v1591
    %2185 = vmatpush1.bf16.msra.mxu0 %v1590
    %2186 = vmatprep.subr.bf16.mxu0 %v1599
    %2187 = vmatpush1.bf16.msra.mxu0 %v1598
    %2188 = vmatprep.subr.bf16.mxu0 %v1607
    %2189 = vmatpush1.bf16.msra.mxu0 %v1606
    %2190 = vmatprep.mubr.bf16.mxu0 %v414
    %2191 = vmatmul.mubr.bf16.gmra.mrb[0].mxu0 %v413
    %v2192 = vpop.f32.mrb[0].mxu0
    %v2193 = vadd.f32 %v693, %v2192
    %v2194 = vpop.f32.mrb[0].mxu0
    %v2195 = vadd.f32 %v697, %v2194
    %v2196 = vpop.f32.mrb[0].mxu0
    %v2197 = vpop.f32.mrb[0].mxu0
    %2198 = vdwg.mxu0
    %2199 = vmatprep.subr.bf16.mxu0 %v1615
    %2200 = vmatpush1.bf16.msra.mxu0 %v1614
    %2201 = vmatprep.subr.bf16.mxu0 %v1623
    %2202 = vmatpush1.bf16.msra.mxu0 %v1622
    %2203 = vmatprep.subr.bf16.mxu0 %v1631
    %2204 = vmatpush1.bf16.msra.mxu0 %v1630
    %2205 = vmatprep.subr.bf16.mxu0 %v1639
    %2206 = vmatpush1.bf16.msra.mxu0 %v1638
    %2207 = vmatprep.subr.bf16.mxu0 %v1647
    %2208 = vmatpush1.bf16.msra.mxu0 %v1646
    %2209 = vmatprep.subr.bf16.mxu0 %v1655
    %2210 = vmatpush1.bf16.msra.mxu0 %v1654
    %2211 = vmatprep.subr.bf16.mxu0 %v1663
    %2212 = vmatpush1.bf16.msra.mxu0 %v1662
    %2213 = vmatprep.subr.bf16.mxu0 %v1671
    %2214 = vmatpush1.bf16.msra.mxu0 %v1670
    %2215 = vmatprep.subr.bf16.mxu0 %v1679
    %2216 = vmatpush1.bf16.msra.mxu0 %v1678
    %2217 = vmatprep.subr.bf16.mxu0 %v1687
    %2218 = vmatpush1.bf16.msra.mxu0 %v1686
    %2219 = vmatprep.subr.bf16.mxu0 %v1695
    %2220 = vmatpush1.bf16.msra.mxu0 %v1694
    %2221 = vmatprep.subr.bf16.mxu0 %v1703
    %2222 = vmatpush1.bf16.msra.mxu0 %v1702
    %2223 = vmatprep.subr.bf16.mxu0 %v1711
    %2224 = vmatpush1.bf16.msra.mxu0 %v1710
    %2225 = vmatprep.subr.bf16.mxu0 %v1719
    %2226 = vmatpush1.bf16.msra.mxu0 %v1718
    %2227 = vmatprep.subr.bf16.mxu0 %v1727
    %2228 = vmatpush1.bf16.msra.mxu0 %v1726
    %2229 = vmatprep.subr.bf16.mxu0 %v1735
    %2230 = vmatpush1.bf16.msra.mxu0 %v1734
    %2231 = vmatprep.mubr.bf16.mxu0 %v416
    %2232 = vmatmul.mubr.bf16.gmra.mrb[0].mxu0 %v415
    %v2233 = vpop.f32.mrb[0].mxu0
    %v2234 = vadd.f32 %v2193, %v2233
    %v2235 = vpop.f32.mrb[0].mxu0
    %v2236 = vadd.f32 %v2195, %v2235
    %v2237 = vpop.f32.mrb[0].mxu0
    %v2238 = vpop.f32.mrb[0].mxu0
    %2239 = vdwg.mxu0
    %2240 = vmatprep.subr.bf16.mxu0 %v1489
    %2241 = vmatpush1.bf16.msra.mxu0 %v1488
    %2242 = vmatprep.subr.bf16.mxu0 %v1497
    %2243 = vmatpush1.bf16.msra.mxu0 %v1496
    %2244 = vmatprep.subr.bf16.mxu0 %v1505
    %2245 = vmatpush1.bf16.msra.mxu0 %v1504
    %2246 = vmatprep.subr.bf16.mxu0 %v1513
    %2247 = vmatpush1.bf16.msra.mxu0 %v1512
    %2248 = vmatprep.subr.bf16.mxu0 %v1521
    %2249 = vmatpush1.bf16.msra.mxu0 %v1520
    %2250 = vmatprep.subr.bf16.mxu0 %v1529
    %2251 = vmatpush1.bf16.msra.mxu0 %v1528
    %2252 = vmatprep.subr.bf16.mxu0 %v1537
    %2253 = vmatpush1.bf16.msra.mxu0 %v1536
    %2254 = vmatprep.subr.bf16.mxu0 %v1545
    %2255 = vmatpush1.bf16.msra.mxu0 %v1544
    %2256 = vmatprep.subr.bf16.mxu0 %v1553
    %2257 = vmatpush1.bf16.msra.mxu0 %v1552
    %2258 = vmatprep.subr.bf16.mxu0 %v1561
    %2259 = vmatpush1.bf16.msra.mxu0 %v1560
    %2260 = vmatprep.subr.bf16.mxu0 %v1569
    %2261 = vmatpush1.bf16.msra.mxu0 %v1568
    %2262 = vmatprep.subr.bf16.mxu0 %v1577
    %2263 = vmatpush1.bf16.msra.mxu0 %v1576
    %2264 = vmatprep.subr.bf16.mxu0 %v1585
    %2265 = vmatpush1.bf16.msra.mxu0 %v1584
    %2266 = vmatprep.subr.bf16.mxu0 %v1593
    %2267 = vmatpush1.bf16.msra.mxu0 %v1592
    %2268 = vmatprep.subr.bf16.mxu0 %v1601
    %2269 = vmatpush1.bf16.msra.mxu0 %v1600
    %2270 = vmatprep.subr.bf16.mxu0 %v1609
    %2271 = vmatpush1.bf16.msra.mxu0 %v1608
    %2272 = vmatprep.mubr.bf16.mxu0 %v414
    %2273 = vmatmul.mubr.bf16.gmra.mrb[0].mxu0 %v413
    %v2274 = vpop.f32.mrb[0].mxu0
    %v2275 = vadd.f32 %v701, %v2274
    %v2276 = vpop.f32.mrb[0].mxu0
    %v2277 = vadd.f32 %v705, %v2276
    %v2278 = vpop.f32.mrb[0].mxu0
    %v2279 = vpop.f32.mrb[0].mxu0
    %2280 = vdwg.mxu0
    %2281 = vmatprep.subr.bf16.mxu0 %v1617
    %2282 = vmatpush1.bf16.msra.mxu0 %v1616
    %2283 = vmatprep.subr.bf16.mxu0 %v1625
    %2284 = vmatpush1.bf16.msra.mxu0 %v1624
    %2285 = vmatprep.subr.bf16.mxu0 %v1633
    %2286 = vmatpush1.bf16.msra.mxu0 %v1632
    %2287 = vmatprep.subr.bf16.mxu0 %v1641
    %2288 = vmatpush1.bf16.msra.mxu0 %v1640
    %2289 = vmatprep.subr.bf16.mxu0 %v1649
    %2290 = vmatpush1.bf16.msra.mxu0 %v1648
    %2291 = vmatprep.subr.bf16.mxu0 %v1657
    %2292 = vmatpush1.bf16.msra.mxu0 %v1656
    %2293 = vmatprep.subr.bf16.mxu0 %v1665
    %2294 = vmatpush1.bf16.msra.mxu0 %v1664
    %2295 = vmatprep.subr.bf16.mxu0 %v1673
    %2296 = vmatpush1.bf16.msra.mxu0 %v1672
    %2297 = vmatprep.subr.bf16.mxu0 %v1681
    %2298 = vmatpush1.bf16.msra.mxu0 %v1680
    %2299 = vmatprep.subr.bf16.mxu0 %v1689
    %2300 = vmatpush1.bf16.msra.mxu0 %v1688
    %2301 = vmatprep.subr.bf16.mxu0 %v1697
    %2302 = vmatpush1.bf16.msra.mxu0 %v1696
    %2303 = vmatprep.subr.bf16.mxu0 %v1705
    %2304 = vmatpush1.bf16.msra.mxu0 %v1704
    %2305 = vmatprep.subr.bf16.mxu0 %v1713
    %2306 = vmatpush1.bf16.msra.mxu0 %v1712
    %2307 = vmatprep.subr.bf16.mxu0 %v1721
    %2308 = vmatpush1.bf16.msra.mxu0 %v1720
    %2309 = vmatprep.subr.bf16.mxu0 %v1729
    %2310 = vmatpush1.bf16.msra.mxu0 %v1728
    %2311 = vmatprep.subr.bf16.mxu0 %v1737
    %2312 = vmatpush1.bf16.msra.mxu0 %v1736
    %2313 = vmatprep.mubr.bf16.mxu0 %v416
    %2314 = vmatmul.mubr.bf16.gmra.mrb[0].mxu0 %v415
    %v2315 = vpop.f32.mrb[0].mxu0
    %v2316 = vadd.f32 %v2275, %v2315
    %v2317 = vpop.f32.mrb[0].mxu0
    %v2318 = vadd.f32 %v2277, %v2317
    %v2319 = vpop.f32.mrb[0].mxu0
    %v2320 = vpop.f32.mrb[0].mxu0
    %2321 = vdwg.mxu0
    %v2322 = vmax.f32 %v2070, 0.0
    %v2323 = vmax.f32 %v2072, 0.0
    %v2324 = vmax.f32 %v2152, 0.0
    %v2325 = vmax.f32 %v2154, 0.0
    %v2326 = vmax.f32 %v2234, 0.0
    %v2327 = vmax.f32 %v2236, 0.0
    %v2328 = vmax.f32 %v2316, 0.0
    %v2329 = vmax.f32 %v2318, 0.0
    %v2330 = vpack.c.bf16 %v2322, %v2322
    %v2331 = vpack.c.bf16 %v2323, %v2323
    %v2332 = vpack.c.bf16 %v2324, %v2324
    %v2333 = vpack.c.bf16 %v2325, %v2325
    %v2334 = vpack.c.bf16 %v2326, %v2326
    %v2335 = vpack.c.bf16 %v2327, %v2327
    %v2336 = vpack.c.bf16 %v2328, %v2328
    %v2337 = vpack.c.bf16 %v2329, %v2329
    %v2338 = vld [vmem:[#allocation8] sm:$0xf]
    %v2339 = vld [vmem:[#allocation8 + $0x4] sm:$0xf]
    %v2340 = vld [vmem:[#allocation8 + $0x8] sm:$0xf]
    %v2341 = vld [vmem:[#allocation8 + $0xc] sm:$0xf]
    %v2342 = vld [vmem:[#allocation8 + $0x10] sm:$0xf]
    %v2343 = vld [vmem:[#allocation8 + $0x14] sm:$0xf]
    %v2344 = vld [vmem:[#allocation8 + $0x18] sm:$0xf]
    %v2345 = vld [vmem:[#allocation8 + $0x1c] sm:$0xf]
    %v2346 = vld [vmem:[#allocation8 + $0x20] sm:$0xf]
    %v2347 = vld [vmem:[#allocation8 + $0x24] sm:$0xf]
    %v2348 = vld [vmem:[#allocation8 + $0x28] sm:$0xf]
    %v2349 = vld [vmem:[#allocation8 + $0x2c] sm:$0xf]
    %v2350 = vld [vmem:[#allocation8 + $0x30] sm:$0xf]
    %v2351 = vld [vmem:[#allocation8 + $0x34] sm:$0xf]
    %v2352 = vld [vmem:[#allocation8 + $0x38] sm:$0xf]
    %v2353 = vld [vmem:[#allocation8 + $0x3c] sm:$0xf]
    %v2354 = vld [vmem:[#allocation8 + $0x40] sm:$0xf]
    %v2355 = vld [vmem:[#allocation8 + $0x44] sm:$0xf]
    %v2356 = vld [vmem:[#allocation8 + $0x48] sm:$0xf]
    %v2357 = vld [vmem:[#allocation8 + $0x4c] sm:$0xf]
    %v2358 = vld [vmem:[#allocation8 + $0x50] sm:$0xf]
    %v2359 = vld [vmem:[#allocation8 + $0x54] sm:$0xf]
    %v2360 = vld [vmem:[#allocation8 + $0x58] sm:$0xf]
    %v2361 = vld [vmem:[#allocation8 + $0x5c] sm:$0xf]
    %v2362 = vld [vmem:[#allocation8 + $0x60] sm:$0xf]
    %v2363 = vld [vmem:[#allocation8 + $0x64] sm:$0xf]
    %v2364 = vld [vmem:[#allocation8 + $0x68] sm:$0xf]
    %v2365 = vld [vmem:[#allocation8 + $0x6c] sm:$0xf]
    %v2366 = vld [vmem:[#allocation8 + $0x70] sm:$0xf]
    %v2367 = vld [vmem:[#allocation8 + $0x74] sm:$0xf]
    %v2368 = vld [vmem:[#allocation8 + $0x78] sm:$0xf]
    %v2369 = vld [vmem:[#allocation8 + $0x7c] sm:$0xf]
    %v2370 = vld [vmem:[#allocation8 + $0x80] sm:$0xf]
    %v2371 = vld [vmem:[#allocation8 + $0x84] sm:$0xf]
    %v2372 = vld [vmem:[#allocation8 + $0x88] sm:$0xf]
    %v2373 = vld [vmem:[#allocation8 + $0x8c] sm:$0xf]
    %v2374 = vld [vmem:[#allocation8 + $0x90] sm:$0xf]
    %v2375 = vld [vmem:[#allocation8 + $0x94] sm:$0xf]
    %v2376 = vld [vmem:[#allocation8 + $0x98] sm:$0xf]
    %v2377 = vld [vmem:[#allocation8 + $0x9c] sm:$0xf]
    %v2378 = vld [vmem:[#allocation8 + $0xa0] sm:$0xf]
    %v2379 = vld [vmem:[#allocation8 + $0xa4] sm:$0xf]
    %v2380 = vld [vmem:[#allocation8 + $0xa8] sm:$0xf]
    %v2381 = vld [vmem:[#allocation8 + $0xac] sm:$0xf]
    %v2382 = vld [vmem:[#allocation8 + $0xb0] sm:$0xf]
    %v2383 = vld [vmem:[#allocation8 + $0xb4] sm:$0xf]
    %v2384 = vld [vmem:[#allocation8 + $0xb8] sm:$0xf]
    %v2385 = vld [vmem:[#allocation8 + $0xbc] sm:$0xf]
    %v2386 = vld [vmem:[#allocation8 + $0xc0] sm:$0xf]
    %v2387 = vld [vmem:[#allocation8 + $0xc4] sm:$0xf]
    %v2388 = vld [vmem:[#allocation8 + $0xc8] sm:$0xf]
    %v2389 = vld [vmem:[#allocation8 + $0xcc] sm:$0xf]
    %v2390 = vld [vmem:[#allocation8 + $0xd0] sm:$0xf]
    %v2391 = vld [vmem:[#allocation8 + $0xd4] sm:$0xf]
    %v2392 = vld [vmem:[#allocation8 + $0xd8] sm:$0xf]
    %v2393 = vld [vmem:[#allocation8 + $0xdc] sm:$0xf]
    %v2394 = vld [vmem:[#allocation8 + $0xe0] sm:$0xf]
    %v2395 = vld [vmem:[#allocation8 + $0xe4] sm:$0xf]
    %v2396 = vld [vmem:[#allocation8 + $0xe8] sm:$0xf]
    %v2397 = vld [vmem:[#allocation8 + $0xec] sm:$0xf]
    %v2398 = vld [vmem:[#allocation8 + $0xf0] sm:$0xf]
    %v2399 = vld [vmem:[#allocation8 + $0xf4] sm:$0xf]
    %v2400 = vld [vmem:[#allocation8 + $0xf8] sm:$0xf]
    %v2401 = vld [vmem:[#allocation8 + $0xfc] sm:$0xf]
    %v2402 = vld [vmem:[#allocation8 + $0x100] sm:$0xf]
    %v2403 = vld [vmem:[#allocation8 + $0x104] sm:$0xf]
    %v2404 = vld [vmem:[#allocation8 + $0x108] sm:$0xf]
    %v2405 = vld [vmem:[#allocation8 + $0x10c] sm:$0xf]
    %v2406 = vld [vmem:[#allocation8 + $0x110] sm:$0xf]
    %v2407 = vld [vmem:[#allocation8 + $0x114] sm:$0xf]
    %v2408 = vld [vmem:[#allocation8 + $0x118] sm:$0xf]
    %v2409 = vld [vmem:[#allocation8 + $0x11c] sm:$0xf]
    %v2410 = vld [vmem:[#allocation8 + $0x120] sm:$0xf]
    %v2411 = vld [vmem:[#allocation8 + $0x124] sm:$0xf]
    %v2412 = vld [vmem:[#allocation8 + $0x128] sm:$0xf]
    %v2413 = vld [vmem:[#allocation8 + $0x12c] sm:$0xf]
    %v2414 = vld [vmem:[#allocation8 + $0x130] sm:$0xf]
    %v2415 = vld [vmem:[#allocation8 + $0x134] sm:$0xf]
    %v2416 = vld [vmem:[#allocation8 + $0x138] sm:$0xf]
    %v2417 = vld [vmem:[#allocation8 + $0x13c] sm:$0xf]
    %v2418 = vld [vmem:[#allocation8 + $0x140] sm:$0xf]
    %v2419 = vld [vmem:[#allocation8 + $0x144] sm:$0xf]
    %v2420 = vld [vmem:[#allocation8 + $0x148] sm:$0xf]
    %v2421 = vld [vmem:[#allocation8 + $0x14c] sm:$0xf]
    %v2422 = vld [vmem:[#allocation8 + $0x150] sm:$0xf]
    %v2423 = vld [vmem:[#allocation8 + $0x154] sm:$0xf]
    %v2424 = vld [vmem:[#allocation8 + $0x158] sm:$0xf]
    %v2425 = vld [vmem:[#allocation8 + $0x15c] sm:$0xf]
    %v2426 = vld [vmem:[#allocation8 + $0x160] sm:$0xf]
    %v2427 = vld [vmem:[#allocation8 + $0x164] sm:$0xf]
    %v2428 = vld [vmem:[#allocation8 + $0x168] sm:$0xf]
    %v2429 = vld [vmem:[#allocation8 + $0x16c] sm:$0xf]
    %v2430 = vld [vmem:[#allocation8 + $0x170] sm:$0xf]
    %v2431 = vld [vmem:[#allocation8 + $0x174] sm:$0xf]
    %v2432 = vld [vmem:[#allocation8 + $0x178] sm:$0xf]
    %v2433 = vld [vmem:[#allocation8 + $0x17c] sm:$0xf]
    %v2434 = vld [vmem:[#allocation8 + $0x180] sm:$0xf]
    %v2435 = vld [vmem:[#allocation8 + $0x184] sm:$0xf]
    %v2436 = vld [vmem:[#allocation8 + $0x188] sm:$0xf]
    %v2437 = vld [vmem:[#allocation8 + $0x18c] sm:$0xf]
    %v2438 = vld [vmem:[#allocation8 + $0x190] sm:$0xf]
    %v2439 = vld [vmem:[#allocation8 + $0x194] sm:$0xf]
    %v2440 = vld [vmem:[#allocation8 + $0x198] sm:$0xf]
    %v2441 = vld [vmem:[#allocation8 + $0x19c] sm:$0xf]
    %v2442 = vld [vmem:[#allocation8 + $0x1a0] sm:$0xf]
    %v2443 = vld [vmem:[#allocation8 + $0x1a4] sm:$0xf]
    %v2444 = vld [vmem:[#allocation8 + $0x1a8] sm:$0xf]
    %v2445 = vld [vmem:[#allocation8 + $0x1ac] sm:$0xf]
    %v2446 = vld [vmem:[#allocation8 + $0x1b0] sm:$0xf]
    %v2447 = vld [vmem:[#allocation8 + $0x1b4] sm:$0xf]
    %v2448 = vld [vmem:[#allocation8 + $0x1b8] sm:$0xf]
    %v2449 = vld [vmem:[#allocation8 + $0x1bc] sm:$0xf]
    %v2450 = vld [vmem:[#allocation8 + $0x1c0] sm:$0xf]
    %v2451 = vld [vmem:[#allocation8 + $0x1c4] sm:$0xf]
    %v2452 = vld [vmem:[#allocation8 + $0x1c8] sm:$0xf]
    %v2453 = vld [vmem:[#allocation8 + $0x1cc] sm:$0xf]
    %v2454 = vld [vmem:[#allocation8 + $0x1d0] sm:$0xf]
    %v2455 = vld [vmem:[#allocation8 + $0x1d4] sm:$0xf]
    %v2456 = vld [vmem:[#allocation8 + $0x1d8] sm:$0xf]
    %v2457 = vld [vmem:[#allocation8 + $0x1dc] sm:$0xf]
    %v2458 = vld [vmem:[#allocation8 + $0x1e0] sm:$0xf]
    %v2459 = vld [vmem:[#allocation8 + $0x1e4] sm:$0xf]
    %v2460 = vld [vmem:[#allocation8 + $0x1e8] sm:$0xf]
    %v2461 = vld [vmem:[#allocation8 + $0x1ec] sm:$0xf]
    %v2462 = vld [vmem:[#allocation8 + $0x1f0] sm:$0xf]
    %v2463 = vld [vmem:[#allocation8 + $0x1f4] sm:$0xf]
    %v2464 = vld [vmem:[#allocation8 + $0x1f8] sm:$0xf]
    %v2465 = vld [vmem:[#allocation8 + $0x1fc] sm:$0xf]
    %v2467 = vlaneseq
    %v2468 = vshrl.u32 %v2467, 7
    %v2469 = vsub.s32 0, %v2468
    %v2470 = vrot.slane %v81, %v2469
    %v2600 = vunpack.c.l.b16 %v2338
    %v2601 = vunpack.c.l.b16 %v2339
    %v2602 = vunpack.c.l.b16 %v2340
    %v2603 = vunpack.c.l.b16 %v2341
    %v2604 = vunpack.c.l.b16 %v2342
    %v2605 = vunpack.c.l.b16 %v2343
    %v2606 = vunpack.c.l.b16 %v2344
    %v2607 = vunpack.c.l.b16 %v2345
    %v2608 = vunpack.c.l.b16 %v2346
    %v2609 = vunpack.c.l.b16 %v2347
    %v2610 = vunpack.c.l.b16 %v2348
    %v2611 = vunpack.c.l.b16 %v2349
    %v2612 = vunpack.c.l.b16 %v2350
    %v2613 = vunpack.c.l.b16 %v2351
    %v2614 = vunpack.c.l.b16 %v2352
    %v2615 = vunpack.c.l.b16 %v2353
    %v2616 = vunpack.c.l.b16 %v2354
    %v2617 = vunpack.c.l.b16 %v2355
    %v2618 = vunpack.c.l.b16 %v2356
    %v2619 = vunpack.c.l.b16 %v2357
    %v2620 = vunpack.c.l.b16 %v2358
    %v2621 = vunpack.c.l.b16 %v2359
    %v2622 = vunpack.c.l.b16 %v2360
    %v2623 = vunpack.c.l.b16 %v2361
    %v2624 = vunpack.c.l.b16 %v2362
    %v2625 = vunpack.c.l.b16 %v2363
    %v2626 = vunpack.c.l.b16 %v2364
    %v2627 = vunpack.c.l.b16 %v2365
    %v2628 = vunpack.c.l.b16 %v2366
    %v2629 = vunpack.c.l.b16 %v2367
    %v2630 = vunpack.c.l.b16 %v2368
    %v2631 = vunpack.c.l.b16 %v2369
    %v2632 = vunpack.c.l.b16 %v2370
    %v2633 = vunpack.c.l.b16 %v2371
    %v2634 = vunpack.c.l.b16 %v2372
    %v2635 = vunpack.c.l.b16 %v2373
    %v2636 = vunpack.c.l.b16 %v2374
    %v2637 = vunpack.c.l.b16 %v2375
    %v2638 = vunpack.c.l.b16 %v2376
    %v2639 = vunpack.c.l.b16 %v2377
    %v2640 = vunpack.c.l.b16 %v2378
    %v2641 = vunpack.c.l.b16 %v2379
    %v2642 = vunpack.c.l.b16 %v2380
    %v2643 = vunpack.c.l.b16 %v2381
    %v2644 = vunpack.c.l.b16 %v2382
    %v2645 = vunpack.c.l.b16 %v2383
    %v2646 = vunpack.c.l.b16 %v2384
    %v2647 = vunpack.c.l.b16 %v2385
    %v2648 = vunpack.c.l.b16 %v2386
    %v2649 = vunpack.c.l.b16 %v2387
    %v2650 = vunpack.c.l.b16 %v2388
    %v2651 = vunpack.c.l.b16 %v2389
    %v2652 = vunpack.c.l.b16 %v2390
    %v2653 = vunpack.c.l.b16 %v2391
    %v2654 = vunpack.c.l.b16 %v2392
    %v2655 = vunpack.c.l.b16 %v2393
    %v2656 = vunpack.c.l.b16 %v2394
    %v2657 = vunpack.c.l.b16 %v2395
    %v2658 = vunpack.c.l.b16 %v2396
    %v2659 = vunpack.c.l.b16 %v2397
    %v2660 = vunpack.c.l.b16 %v2398
    %v2661 = vunpack.c.l.b16 %v2399
    %v2662 = vunpack.c.l.b16 %v2400
    %v2663 = vunpack.c.l.b16 %v2401
    %v2664 = vunpack.c.l.b16 %v2402
    %v2665 = vunpack.c.l.b16 %v2403
    %v2666 = vunpack.c.l.b16 %v2404
    %v2667 = vunpack.c.l.b16 %v2405
    %v2668 = vunpack.c.l.b16 %v2406
    %v2669 = vunpack.c.l.b16 %v2407
    %v2670 = vunpack.c.l.b16 %v2408
    %v2671 = vunpack.c.l.b16 %v2409
    %v2672 = vunpack.c.l.b16 %v2410
    %v2673 = vunpack.c.l.b16 %v2411
    %v2674 = vunpack.c.l.b16 %v2412
    %v2675 = vunpack.c.l.b16 %v2413
    %v2676 = vunpack.c.l.b16 %v2414
    %v2677 = vunpack.c.l.b16 %v2415
    %v2678 = vunpack.c.l.b16 %v2416
    %v2679 = vunpack.c.l.b16 %v2417
    %v2680 = vunpack.c.l.b16 %v2418
    %v2681 = vunpack.c.l.b16 %v2419
    %v2682 = vunpack.c.l.b16 %v2420
    %v2683 = vunpack.c.l.b16 %v2421
    %v2684 = vunpack.c.l.b16 %v2422
    %v2685 = vunpack.c.l.b16 %v2423
    %v2686 = vunpack.c.l.b16 %v2424
    %v2687 = vunpack.c.l.b16 %v2425
    %v2688 = vunpack.c.l.b16 %v2426
    %v2689 = vunpack.c.l.b16 %v2427
    %v2690 = vunpack.c.l.b16 %v2428
    %v2691 = vunpack.c.l.b16 %v2429
    %v2692 = vunpack.c.l.b16 %v2430
    %v2693 = vunpack.c.l.b16 %v2431
    %v2694 = vunpack.c.l.b16 %v2432
    %v2695 = vunpack.c.l.b16 %v2433
    %v2696 = vunpack.c.l.b16 %v2434
    %v2697 = vunpack.c.l.b16 %v2435
    %v2698 = vunpack.c.l.b16 %v2436
    %v2699 = vunpack.c.l.b16 %v2437
    %v2700 = vunpack.c.l.b16 %v2438
    %v2701 = vunpack.c.l.b16 %v2439
    %v2702 = vunpack.c.l.b16 %v2440
    %v2703 = vunpack.c.l.b16 %v2441
    %v2704 = vunpack.c.l.b16 %v2442
    %v2705 = vunpack.c.l.b16 %v2443
    %v2706 = vunpack.c.l.b16 %v2444
    %v2707 = vunpack.c.l.b16 %v2445
    %v2708 = vunpack.c.l.b16 %v2446
    %v2709 = vunpack.c.l.b16 %v2447
    %v2710 = vunpack.c.l.b16 %v2448
    %v2711 = vunpack.c.l.b16 %v2449
    %v2712 = vunpack.c.l.b16 %v2450
    %v2713 = vunpack.c.l.b16 %v2451
    %v2714 = vunpack.c.l.b16 %v2452
    %v2715 = vunpack.c.l.b16 %v2453
    %v2716 = vunpack.c.l.b16 %v2454
    %v2717 = vunpack.c.l.b16 %v2455
    %v2718 = vunpack.c.l.b16 %v2456
    %v2719 = vunpack.c.l.b16 %v2457
    %v2720 = vunpack.c.l.b16 %v2458
    %v2721 = vunpack.c.l.b16 %v2459
    %v2722 = vunpack.c.l.b16 %v2460
    %v2723 = vunpack.c.l.b16 %v2461
    %v2724 = vunpack.c.l.b16 %v2462
    %v2725 = vunpack.c.l.b16 %v2463
    %v2726 = vunpack.c.l.b16 %v2464
    %v2727 = vunpack.c.l.b16 %v2465
    %v2728 = vpack.c.b16 %v2601, %v2600
    %v2729 = vpack.c.b16 %v2603, %v2602
    %v2730 = vpack.c.b16 %v2605, %v2604
    %v2731 = vpack.c.b16 %v2607, %v2606
    %v2732 = vpack.c.b16 %v2609, %v2608
    %v2733 = vpack.c.b16 %v2611, %v2610
    %v2734 = vpack.c.b16 %v2613, %v2612
    %v2735 = vpack.c.b16 %v2615, %v2614
    %v2736 = vpack.c.b16 %v2617, %v2616
    %v2737 = vpack.c.b16 %v2619, %v2618
    %v2738 = vpack.c.b16 %v2621, %v2620
    %v2739 = vpack.c.b16 %v2623, %v2622
    %v2740 = vpack.c.b16 %v2625, %v2624
    %v2741 = vpack.c.b16 %v2627, %v2626
    %v2742 = vpack.c.b16 %v2629, %v2628
    %v2743 = vpack.c.b16 %v2631, %v2630
    %v2744 = vpack.c.b16 %v2633, %v2632
    %v2745 = vpack.c.b16 %v2635, %v2634
    %v2746 = vpack.c.b16 %v2637, %v2636
    %v2747 = vpack.c.b16 %v2639, %v2638
    %v2748 = vpack.c.b16 %v2641, %v2640
    %v2749 = vpack.c.b16 %v2643, %v2642
    %v2750 = vpack.c.b16 %v2645, %v2644
    %v2751 = vpack.c.b16 %v2647, %v2646
    %v2752 = vpack.c.b16 %v2649, %v2648
    %v2753 = vpack.c.b16 %v2651, %v2650
    %v2754 = vpack.c.b16 %v2653, %v2652
    %v2755 = vpack.c.b16 %v2655, %v2654
    %v2756 = vpack.c.b16 %v2657, %v2656
    %v2757 = vpack.c.b16 %v2659, %v2658
    %v2758 = vpack.c.b16 %v2661, %v2660
    %v2759 = vpack.c.b16 %v2663, %v2662
    %v2760 = vpack.c.b16 %v2665, %v2664
    %v2761 = vpack.c.b16 %v2667, %v2666
    %v2762 = vpack.c.b16 %v2669, %v2668
    %v2763 = vpack.c.b16 %v2671, %v2670
    %v2764 = vpack.c.b16 %v2673, %v2672
    %v2765 = vpack.c.b16 %v2675, %v2674
    %v2766 = vpack.c.b16 %v2677, %v2676
    %v2767 = vpack.c.b16 %v2679, %v2678
    %v2768 = vpack.c.b16 %v2681, %v2680
    %v2769 = vpack.c.b16 %v2683, %v2682
    %v2770 = vpack.c.b16 %v2685, %v2684
    %v2771 = vpack.c.b16 %v2687, %v2686
    %v2772 = vpack.c.b16 %v2689, %v2688
    %v2773 = vpack.c.b16 %v2691, %v2690
    %v2774 = vpack.c.b16 %v2693, %v2692
    %v2775 = vpack.c.b16 %v2695, %v2694
    %v2776 = vpack.c.b16 %v2697, %v2696
    %v2777 = vpack.c.b16 %v2699, %v2698
    %v2778 = vpack.c.b16 %v2701, %v2700
    %v2779 = vpack.c.b16 %v2703, %v2702
    %v2780 = vpack.c.b16 %v2705, %v2704
    %v2781 = vpack.c.b16 %v2707, %v2706
    %v2782 = vpack.c.b16 %v2709, %v2708
    %v2783 = vpack.c.b16 %v2711, %v2710
    %v2784 = vpack.c.b16 %v2713, %v2712
    %v2785 = vpack.c.b16 %v2715, %v2714
    %v2786 = vpack.c.b16 %v2717, %v2716
    %v2787 = vpack.c.b16 %v2719, %v2718
    %v2788 = vpack.c.b16 %v2721, %v2720
    %v2789 = vpack.c.b16 %v2723, %v2722
    %v2790 = vpack.c.b16 %v2725, %v2724
    %v2791 = vpack.c.b16 %v2727, %v2726
    %2856 = vmatprep.subr.bf16.mxu0 0
    %2857 = vmatpush1.bf16.msra.mxu0 %v2728
    %2858 = vmatprep.subr.bf16.mxu0 0
    %2859 = vmatpush1.bf16.msra.mxu0 %v2729
    %2860 = vmatprep.subr.bf16.mxu0 0
    %2861 = vmatpush1.bf16.msra.mxu0 %v2730
    %2862 = vmatprep.subr.bf16.mxu0 0
    %2863 = vmatpush1.bf16.msra.mxu0 %v2731
    %2864 = vmatprep.subr.bf16.mxu0 0
    %2865 = vmatpush1.bf16.msra.mxu0 %v2732
    %2866 = vmatprep.subr.bf16.mxu0 0
    %2867 = vmatpush1.bf16.msra.mxu0 %v2733
    %2868 = vmatprep.subr.bf16.mxu0 0
    %2869 = vmatpush1.bf16.msra.mxu0 %v2734
    %2870 = vmatprep.subr.bf16.mxu0 0
    %2871 = vmatpush1.bf16.msra.mxu0 %v2735
    %2872 = vmatprep.subr.bf16.mxu0 0
    %2873 = vmatpush1.bf16.msra.mxu0 %v2736
    %2874 = vmatprep.subr.bf16.mxu0 0
    %2875 = vmatpush1.bf16.msra.mxu0 %v2737
    %2876 = vmatprep.subr.bf16.mxu0 0
    %2877 = vmatpush1.bf16.msra.mxu0 %v2738
    %2878 = vmatprep.subr.bf16.mxu0 0
    %2879 = vmatpush1.bf16.msra.mxu0 %v2739
    %2880 = vmatprep.subr.bf16.mxu0 0
    %2881 = vmatpush1.bf16.msra.mxu0 %v2740
    %2882 = vmatprep.subr.bf16.mxu0 0
    %2883 = vmatpush1.bf16.msra.mxu0 %v2741
    %2884 = vmatprep.subr.bf16.mxu0 0
    %2885 = vmatpush1.bf16.msra.mxu0 %v2742
    %2886 = vmatprep.subr.bf16.mxu0 0
    %2887 = vmatpush1.bf16.msra.mxu0 %v2743
    %2888 = vmatprep.mubr.bf16.mxu0 %v2331
    %2889 = vmatmul.mubr.bf16.gmra.mrb[0].mxu0 %v2330
    %v2890 = vpop.f32.mrb[0].mxu0
    %v2891 = vadd.f32 %v2470, %v2890
    %v2892 = vpop.f32.mrb[0].mxu0
    %v2893 = vpop.f32.mrb[0].mxu0
    %v2894 = vpop.f32.mrb[0].mxu0
    %2895 = vdwg.mxu0
    %2896 = vmatprep.subr.bf16.mxu0 0
    %2897 = vmatpush1.bf16.msra.mxu0 %v2744
    %2898 = vmatprep.subr.bf16.mxu0 0
    %2899 = vmatpush1.bf16.msra.mxu0 %v2745
    %2900 = vmatprep.subr.bf16.mxu0 0
    %2901 = vmatpush1.bf16.msra.mxu0 %v2746
    %2902 = vmatprep.subr.bf16.mxu0 0
    %2903 = vmatpush1.bf16.msra.mxu0 %v2747
    %2904 = vmatprep.subr.bf16.mxu0 0
    %2905 = vmatpush1.bf16.msra.mxu0 %v2748
    %2906 = vmatprep.subr.bf16.mxu0 0
    %2907 = vmatpush1.bf16.msra.mxu0 %v2749
    %2908 = vmatprep.subr.bf16.mxu0 0
    %2909 = vmatpush1.bf16.msra.mxu0 %v2750
    %2910 = vmatprep.subr.bf16.mxu0 0
    %2911 = vmatpush1.bf16.msra.mxu0 %v2751
    %2912 = vmatprep.subr.bf16.mxu0 0
    %2913 = vmatpush1.bf16.msra.mxu0 %v2752
    %2914 = vmatprep.subr.bf16.mxu0 0
    %2915 = vmatpush1.bf16.msra.mxu0 %v2753
    %2916 = vmatprep.subr.bf16.mxu0 0
    %2917 = vmatpush1.bf16.msra.mxu0 %v2754
    %2918 = vmatprep.subr.bf16.mxu0 0
    %2919 = vmatpush1.bf16.msra.mxu0 %v2755
    %2920 = vmatprep.subr.bf16.mxu0 0
    %2921 = vmatpush1.bf16.msra.mxu0 %v2756
    %2922 = vmatprep.subr.bf16.mxu0 0
    %2923 = vmatpush1.bf16.msra.mxu0 %v2757
    %2924 = vmatprep.subr.bf16.mxu0 0
    %2925 = vmatpush1.bf16.msra.mxu0 %v2758
    %2926 = vmatprep.subr.bf16.mxu0 0
    %2927 = vmatpush1.bf16.msra.mxu0 %v2759
    %2928 = vmatprep.mubr.bf16.mxu0 %v2333
    %2929 = vmatmul.mubr.bf16.gmra.mrb[0].mxu0 %v2332
    %v2930 = vpop.f32.mrb[0].mxu0
    %v2931 = vadd.f32 %v2891, %v2930
    %v2932 = vpop.f32.mrb[0].mxu0
    %v2933 = vpop.f32.mrb[0].mxu0
    %v2934 = vpop.f32.mrb[0].mxu0
    %2935 = vdwg.mxu0
    %2936 = vmatprep.subr.bf16.mxu0 0
    %2937 = vmatpush1.bf16.msra.mxu0 %v2760
    %2938 = vmatprep.subr.bf16.mxu0 0
    %2939 = vmatpush1.bf16.msra.mxu0 %v2761
    %2940 = vmatprep.subr.bf16.mxu0 0
    %2941 = vmatpush1.bf16.msra.mxu0 %v2762
    %2942 = vmatprep.subr.bf16.mxu0 0
    %2943 = vmatpush1.bf16.msra.mxu0 %v2763
    %2944 = vmatprep.subr.bf16.mxu0 0
    %2945 = vmatpush1.bf16.msra.mxu0 %v2764
    %2946 = vmatprep.subr.bf16.mxu0 0
    %2947 = vmatpush1.bf16.msra.mxu0 %v2765
    %2948 = vmatprep.subr.bf16.mxu0 0
    %2949 = vmatpush1.bf16.msra.mxu0 %v2766
    %2950 = vmatprep.subr.bf16.mxu0 0
    %2951 = vmatpush1.bf16.msra.mxu0 %v2767
    %2952 = vmatprep.subr.bf16.mxu0 0
    %2953 = vmatpush1.bf16.msra.mxu0 %v2768
    %2954 = vmatprep.subr.bf16.mxu0 0
    %2955 = vmatpush1.bf16.msra.mxu0 %v2769
    %2956 = vmatprep.subr.bf16.mxu0 0
    %2957 = vmatpush1.bf16.msra.mxu0 %v2770
    %2958 = vmatprep.subr.bf16.mxu0 0
    %2959 = vmatpush1.bf16.msra.mxu0 %v2771
    %2960 = vmatprep.subr.bf16.mxu0 0
    %2961 = vmatpush1.bf16.msra.mxu0 %v2772
    %2962 = vmatprep.subr.bf16.mxu0 0
    %2963 = vmatpush1.bf16.msra.mxu0 %v2773
    %2964 = vmatprep.subr.bf16.mxu0 0
    %2965 = vmatpush1.bf16.msra.mxu0 %v2774
    %2966 = vmatprep.subr.bf16.mxu0 0
    %2967 = vmatpush1.bf16.msra.mxu0 %v2775
    %2968 = vmatprep.mubr.bf16.mxu0 %v2335
    %2969 = vmatmul.mubr.bf16.gmra.mrb[0].mxu0 %v2334
    %v2970 = vpop.f32.mrb[0].mxu0
    %v2971 = vadd.f32 %v2931, %v2970
    %v2972 = vpop.f32.mrb[0].mxu0
    %v2973 = vpop.f32.mrb[0].mxu0
    %v2974 = vpop.f32.mrb[0].mxu0
    %2975 = vdwg.mxu0
    %2976 = vmatprep.subr.bf16.mxu0 0
    %2977 = vmatpush1.bf16.msra.mxu0 %v2776
    %2978 = vmatprep.subr.bf16.mxu0 0
    %2979 = vmatpush1.bf16.msra.mxu0 %v2777
    %2980 = vmatprep.subr.bf16.mxu0 0
    %2981 = vmatpush1.bf16.msra.mxu0 %v2778
    %2982 = vmatprep.subr.bf16.mxu0 0
    %2983 = vmatpush1.bf16.msra.mxu0 %v2779
    %2984 = vmatprep.subr.bf16.mxu0 0
    %2985 = vmatpush1.bf16.msra.mxu0 %v2780
    %2986 = vmatprep.subr.bf16.mxu0 0
    %2987 = vmatpush1.bf16.msra.mxu0 %v2781
    %2988 = vmatprep.subr.bf16.mxu0 0
    %2989 = vmatpush1.bf16.msra.mxu0 %v2782
    %2990 = vmatprep.subr.bf16.mxu0 0
    %2991 = vmatpush1.bf16.msra.mxu0 %v2783
    %2992 = vmatprep.subr.bf16.mxu0 0
    %2993 = vmatpush1.bf16.msra.mxu0 %v2784
    %2994 = vmatprep.subr.bf16.mxu0 0
    %2995 = vmatpush1.bf16.msra.mxu0 %v2785
    %2996 = vmatprep.subr.bf16.mxu0 0
    %2997 = vmatpush1.bf16.msra.mxu0 %v2786
    %2998 = vmatprep.subr.bf16.mxu0 0
    %2999 = vmatpush1.bf16.msra.mxu0 %v2787
    %3000 = vmatprep.subr.bf16.mxu0 0
    %3001 = vmatpush1.bf16.msra.mxu0 %v2788
    %3002 = vmatprep.subr.bf16.mxu0 0
    %3003 = vmatpush1.bf16.msra.mxu0 %v2789
    %3004 = vmatprep.subr.bf16.mxu0 0
    %3005 = vmatpush1.bf16.msra.mxu0 %v2790
    %3006 = vmatprep.subr.bf16.mxu0 0
    %3007 = vmatpush1.bf16.msra.mxu0 %v2791
    %3008 = vmatprep.mubr.bf16.mxu0 %v2337
    %3009 = vmatmul.mubr.bf16.gmra.mrb[0].mxu0 %v2336
    %v3010 = vpop.f32.mrb[0].mxu0
    %v3011 = vadd.f32 %v2971, %v3010
    %v3012 = vpop.f32.mrb[0].mxu0
    %v3013 = vpop.f32.mrb[0].mxu0
    %v3014 = vpop.f32.mrb[0].mxu0
    %3015 = vdwg.mxu0
    %v3016 = vmax.f32 %v3011, 0.0
    %v3017 = vpack.c.bf16 %v3016, %v3016
    %v3018 = vld [vmem:[%s5] sm:$0xf]
    %v3019 = vld [vmem:[%s5 + $0x4] sm:$0xf]
    %v3020 = vld [vmem:[%s5 + $0x8] sm:$0xf]
    %v3021 = vld [vmem:[%s5 + $0xc] sm:$0xf]
    %v3022 = vld [vmem:[%s5 + $0x10] sm:$0xf]
    %v3023 = vld [vmem:[%s5 + $0x14] sm:$0xf]
    %v3024 = vld [vmem:[%s5 + $0x18] sm:$0xf]
    %v3025 = vld [vmem:[%s5 + $0x1c] sm:$0xf]
    %v3026 = vld [vmem:[%s5 + $0x20] sm:$0xf]
    %v3027 = vld [vmem:[%s5 + $0x24] sm:$0xf]
    %v3028 = vld [vmem:[%s5 + $0x28] sm:$0xf]
    %v3029 = vld [vmem:[%s5 + $0x2c] sm:$0xf]
    %v3030 = vld [vmem:[%s5 + $0x30] sm:$0xf]
    %v3031 = vld [vmem:[%s5 + $0x34] sm:$0xf]
    %v3032 = vld [vmem:[%s5 + $0x38] sm:$0xf]
    %v3033 = vld [vmem:[%s5 + $0x3c] sm:$0xf]
    %v3035 = vlaneseq
    %v3036 = vshrl.u32 %v3035, 7
    %v3037 = vsub.s32 0, %v3036
    %v3038 = vrot.slane %v82, %v3037
    %v3056 = vunpack.c.l.b16 %v3018
    %v3057 = vunpack.c.l.b16 %v3019
    %v3058 = vunpack.c.l.b16 %v3020
    %v3059 = vunpack.c.l.b16 %v3021
    %v3060 = vunpack.c.l.b16 %v3022
    %v3061 = vunpack.c.l.b16 %v3023
    %v3062 = vunpack.c.l.b16 %v3024
    %v3063 = vunpack.c.l.b16 %v3025
    %v3064 = vunpack.c.l.b16 %v3026
    %v3065 = vunpack.c.l.b16 %v3027
    %v3066 = vunpack.c.l.b16 %v3028
    %v3067 = vunpack.c.l.b16 %v3029
    %v3068 = vunpack.c.l.b16 %v3030
    %v3069 = vunpack.c.l.b16 %v3031
    %v3070 = vunpack.c.l.b16 %v3032
    %v3071 = vunpack.c.l.b16 %v3033
    %v3072 = vpack.c.b16 %v3057, %v3056
    %v3073 = vpack.c.b16 %v3059, %v3058
    %v3074 = vpack.c.b16 %v3061, %v3060
    %v3075 = vpack.c.b16 %v3063, %v3062
    %v3076 = vpack.c.b16 %v3065, %v3064
    %v3077 = vpack.c.b16 %v3067, %v3066
    %v3078 = vpack.c.b16 %v3069, %v3068
    %v3079 = vpack.c.b16 %v3071, %v3070
    %3088 = vmatprep.subr.bf16.mxu0 0
    %3089 = vmatpush1.bf16.msra.mxu0 %v3072
    %3090 = vmatprep.subr.bf16.mxu0 0
    %3091 = vmatpush1.bf16.msra.mxu0 %v3073
    %3092 = vmatprep.subr.bf16.mxu0 0
    %3093 = vmatpush1.bf16.msra.mxu0 %v3074
    %3094 = vmatprep.subr.bf16.mxu0 0
    %3095 = vmatpush1.bf16.msra.mxu0 %v3075
    %3096 = vmatprep.subr.bf16.mxu0 0
    %3097 = vmatpush1.bf16.msra.mxu0 %v3076
    %3098 = vmatprep.subr.bf16.mxu0 0
    %3099 = vmatpush1.bf16.msra.mxu0 %v3077
    %3100 = vmatprep.subr.bf16.mxu0 0
    %3101 = vmatpush1.bf16.msra.mxu0 %v3078
    %3102 = vmatprep.subr.bf16.mxu0 0
    %3103 = vmatpush1.bf16.msra.mxu0 %v3079
    %3104 = vmatprep.subr.bf16.mxu0 0
    %3105 = vmatpush1.bf16.msra.mxu0 0
    %3106 = vmatprep.subr.bf16.mxu0 0
    %3107 = vmatpush1.bf16.msra.mxu0 0
    %3108 = vmatprep.subr.bf16.mxu0 0
    %3109 = vmatpush1.bf16.msra.mxu0 0
    %3110 = vmatprep.subr.bf16.mxu0 0
    %3111 = vmatpush1.bf16.msra.mxu0 0
    %3112 = vmatprep.subr.bf16.mxu0 0
    %3113 = vmatpush1.bf16.msra.mxu0 0
    %3114 = vmatprep.subr.bf16.mxu0 0
    %3115 = vmatpush1.bf16.msra.mxu0 0
    %3116 = vmatprep.subr.bf16.mxu0 0
    %3117 = vmatpush1.bf16.msra.mxu0 0
    %3118 = vmatprep.subr.bf16.mxu0 0
    %3119 = vmatpush1.bf16.msra.mxu0 0
    %3120 = vmatprep.mubr.bf16.mxu0 0
    %3121 = vmatmul.mubr.bf16.gmra.mrb[0].mxu0 %v3017
    %v3122 = vpop.f32.mrb[0].mxu0
    %v3123 = vadd.f32 %v3038, %v3122
    %v3124 = vpop.f32.mrb[0].mxu0
    %v3125 = vpop.f32.mrb[0].mxu0
    %v3126 = vpop.f32.mrb[0].mxu0
    %3127 = vdwg.mxu0
    %v3128 = vxor.u32 %v3123, 2147483648
    %v3129 = vmul.f32 %v3128, 1.442695
    %v3130 = vpow.pop %v3129
    %v3131 = vadd.f32 %v3130, 1.0
    %v3132 = vrcp.pop %v3131
    %v3133 = vmul.f32 1.0, %v3132
    %vm3134 = vcmask 48128
    %3135 = vst.msk [vmem:[#allocation10] sm:$0xff] %vm3134, %v3133
    // Predicated region
    $region46: #{signal_model_forward.1} parent=1 // pred_check
      _
    $region47: #{signal_model_forward.1} parent=1 // pred_check_branch
      %3137 = sbr.rel (0) target = $region49
    $region48: #{signal_model_forward.1} parent=1 // pred_region
      %s3139 = ssub.s32 128, 128
      %3140 = vsyncadd [#allocation4], %s3139
      %s3142 = sshll.u32 [#allocation10], 4
      %s3143 = int_to_ptr.vmem [resolvable:$true] %s3142
      %3145 = dma.vmem_to_hbm [thread:$0]  %s3143, 128, %s7, [#allocation4]
    $region49: #{signal_model_forward.1} parent=1 // pred_fallthru
      _
    // Predicated region
    $region50: #{signal_model_forward.1} parent=1 // pred_check
      _
    $region51: #{signal_model_forward.1} parent=1 // pred_check_branch
      %3147 = sbr.rel (0) target = $region53
    $region52: #{signal_model_forward.1} parent=1 // pred_region
      %3148 = dma.done [#allocation4], 128
    $region53: #{signal_model_forward.1} parent=1 // pred_fallthru
      _
    %3149 = vsyncpa [#allocation3], 1
    %3150 = vsyncpa [#allocation6], 1
    %3151 = vsyncpa [#allocation9], 1
    %3152 = vsyncpa [#allocation4], 1

</llo_original>
